<compile_context>
chip_gen: v5e
topology: v5e:2x2
jax: 0.10.0
libtpu: 0.0.40
codegen_flags: <defaults>
</compile_context>

<pallas_src>
import jax
import jax.numpy as jnp
from jax.experimental import pallas as pl
from jax.experimental.pallas import tpu as pltpu

_LANE = 128
_RHO_PAD = -1.0e4   # softplus(-1e4) == 0 exactly -> padded params sample to 0
_NEG_BIG = -1.0e30  # bias pad for output classes -> exp underflows to 0 in softmax


def _round_up(n, m):
    return ((n + m - 1) // m) * m


def _pad2d(a, rows, cols, fill=0.0):
    return jnp.pad(
        a, ((0, rows - a.shape[0]), (0, cols - a.shape[1])), constant_values=fill
    )


def _softplus(x):
    # Overflow-safe log1p(exp(x)); matches torch.log1p(torch.exp(rho)) in range and
    # returns exactly 0.0 for the padded rho value (-1e4).
    return jnp.maximum(x, 0.0) + jnp.log1p(jnp.exp(-jnp.abs(x)))


# ------------------------------ fused kernel ---------------------------------


def _bayesian_mlp2_kernel(
    x_ref,
    w1_mu, w1_rho, w1_eps, b1_mu, b1_rho, b1_eps,
    wm_mu, wm_rho, wm_eps, bm_mu, bm_rho, bm_eps,
    w2_mu, w2_rho, w2_eps, b2_mu, b2_rho, b2_eps,
    o_ref,
):
    def sample_w(mu, rho, eps):
        # Reparametrization trick; bf16 for the MXU (f32 accumulation below).
        return (mu[...] + _softplus(rho[...]) * eps[...]).astype(jnp.bfloat16)

    def sample_b(mu, rho, eps):
        return mu[...] + _softplus(rho[...]) * eps[...]  # f32 bias row (1, d)

    x = x_ref[...]  # already bf16 (streamed as bf16 from the wrapper)

    # Layer 1
    h1 = jnp.dot(x, sample_w(w1_mu, w1_rho, w1_eps),
                 preferred_element_type=jnp.float32) + sample_b(b1_mu, b1_rho, b1_eps)
    h1 = jax.nn.sigmoid(h1).astype(jnp.bfloat16)

    # Mid layer
    h2 = jnp.dot(h1, sample_w(wm_mu, wm_rho, wm_eps),
                 preferred_element_type=jnp.float32) + sample_b(bm_mu, bm_rho, bm_eps)
    h2 = jax.nn.sigmoid(h2).astype(jnp.bfloat16)

    # Output layer + softmax.  Padded class columns already carry a -1e30 bias
    # (and zero weights), so no masking is needed here.
    logits = jnp.dot(h2, sample_w(w2_mu, w2_rho, w2_eps),
                     preferred_element_type=jnp.float32) + sample_b(b2_mu, b2_rho, b2_eps)
    m = jnp.max(logits, axis=-1, keepdims=True)
    e = jnp.exp(logits - m)
    o_ref[...] = (e / jnp.sum(e, axis=-1, keepdims=True)).astype(o_ref.dtype)


# -------------------------------- wrapper ------------------------------------


def _pad_layer(layer, eps, n_in_p, n_out_p, *, b_mu_fill=0.0):
    w_mu, w_rho, b_mu, b_rho = layer
    w_eps, b_eps = eps
    return (
        _pad2d(w_mu, n_in_p, n_out_p, 0.0),
        _pad2d(w_rho, n_in_p, n_out_p, _RHO_PAD),
        _pad2d(w_eps, n_in_p, n_out_p, 0.0),
        _pad2d(b_mu, 1, n_out_p, b_mu_fill),
        _pad2d(b_rho, 1, n_out_p, _RHO_PAD),
        _pad2d(b_eps, 1, n_out_p, 0.0),
    )


def bayesian_mlp2_forward(x, layer_1, mid_layer, layer_2, eps_1, eps_mid, eps_2,
                          *, batch_tile=None):
    """layer_* = (w_mu [in,out], w_rho [in,out], b_mu [1,out], b_rho [1,out]);
    eps_* = (w_eps, b_eps) standard-normal draws with the same shapes."""
    B, f_in = x.shape
    f_hid = layer_1[0].shape[1]
    n_classes = layer_2[0].shape[1]

    d_in = _round_up(f_in, _LANE)
    d_hid = _round_up(f_hid, _LANE)
    d_out = _round_up(n_classes, _LANE)

    if batch_tile is None:
        # Large tiles amortize the ~0.35us/step pipeline overhead; 256 caps VMEM
        # use and still leaves >=2 grid steps for megacore sharding at large B.
        batch_tile = min(256, _round_up(B, 16))
    batch_tile = _round_up(batch_tile, 16)
    b_pad = _round_up(B, batch_tile)

    # Lane-dense padded parameters (+ eps) and bf16-streamed x.
    p1 = _pad_layer(layer_1, eps_1, d_in, d_hid)
    pm = _pad_layer(mid_layer, eps_mid, d_hid, d_hid)
    p2 = _pad_layer(layer_2, eps_2, d_hid, d_out, b_mu_fill=_NEG_BIG)
    x_p = _pad2d(x.astype(jnp.float32), b_pad, d_in, 0.0).astype(jnp.bfloat16)

    const = lambda i: (0, 0)  # resident blocks: fetched once, reused every step
    wspec = lambda r, c: pl.BlockSpec((r, c), const)
    bspec = lambda c: pl.BlockSpec((1, c), const)

    in_specs = [
        pl.BlockSpec((batch_tile, d_in), lambda i: (i, 0)),
        # layer 1
        wspec(d_in, d_hid), wspec(d_in, d_hid), wspec(d_in, d_hid),
        bspec(d_hid), bspec(d_hid), bspec(d_hid),
        # mid layer
        wspec(d_hid, d_hid), wspec(d_hid, d_hid), wspec(d_hid, d_hid),
        bspec(d_hid), bspec(d_hid), bspec(d_hid),
        # layer 2
        wspec(d_hid, d_out), wspec(d_hid, d_out), wspec(d_hid, d_out),
        bspec(d_out), bspec(d_out), bspec(d_out),
    ]

    # Only pass Mosaic compiler params when actually compiling for TPU so the
    # kernel also runs under CPU interpret mode unchanged.
    compiler_params = None
    if jax.default_backend() == "tpu":
        compiler_params = pltpu.CompilerParams(
            dimension_semantics=("parallel",),
        )

    out_p = pl.pallas_call(
        _bayesian_mlp2_kernel,
        out_shape=jax.ShapeDtypeStruct((b_pad, d_out), jnp.float32),
        grid=(b_pad // batch_tile,),
        in_specs=in_specs,
        out_specs=pl.BlockSpec((batch_tile, d_out), lambda i: (i, 0)),
        compiler_params=compiler_params,
    )(x_p, *p1, *pm, *p2)

    return out_p[:B, :n_classes]


# -------------------------- init / eps / reference ---------------------------


def init_bayesian_linear(key, n_in, n_out):
    """Matches BayesianLinear.__init__ parameter distributions."""
    k_wmu, k_wrho, k_bmu, k_brho = jax.random.split(key, 4)
    w_mu = jax.random.uniform(k_wmu, (n_in, n_out), jnp.float32, -1.0, 1.0)
    w_rho = jax.random.uniform(k_wrho, (n_in, n_out), jnp.float32, 0.0, 1.0)
    b_mu = jax.random.uniform(k_bmu, (1, n_out), jnp.float32, -1.0, 1.0)
    b_rho = jax.random.uniform(k_brho, (1, n_out), jnp.float32, 0.0, 1.0)
    return (w_mu, w_rho, b_mu, b_rho)


def sample_eps(key, layer_1, mid_layer, layer_2):
    """eps ~ N(0,1) for each (W, b), like torch's .normal_()."""
    ks = jax.random.split(key, 6)
    n = lambda k, ref: jax.random.normal(k, ref.shape, jnp.float32)
    return (
        (n(ks[0], layer_1[0]), n(ks[1], layer_1[2])),
        (n(ks[2], mid_layer[0]), n(ks[3], mid_layer[2])),
        (n(ks[4], layer_2[0]), n(ks[5], layer_2[2])),
    )


def _reference_forward(x, layer_1, mid_layer, layer_2, eps_1, eps_mid, eps_2):
    """Pure-JAX reference with the same casts as the kernel."""
    def lin(h, layer, eps):
        w_mu, w_rho, b_mu, b_rho = layer
        w_eps, b_eps = eps
        w = (w_mu + _softplus(w_rho) * w_eps).astype(jnp.bfloat16)
        b = b_mu + _softplus(b_rho) * b_eps
        return jnp.dot(h.astype(jnp.bfloat16), w,
                       preferred_element_type=jnp.float32) + b

    h1 = jax.nn.sigmoid(lin(x, layer_1, eps_1))
    h2 = jax.nn.sigmoid(lin(h1, mid_layer, eps_mid))
    return jax.nn.softmax(lin(h2, layer_2, eps_2), axis=1)


if __name__ == "__main__":
    B, F_IN, F_HID, N_CLASSES = 64, 20, 50, 10

    key = jax.random.PRNGKey(0)
    k_x, k1, km, k2, k_eps = jax.random.split(key, 5)

    x = jax.random.normal(k_x, (B, F_IN), jnp.float32)
    layer_1 = init_bayesian_linear(k1, F_IN, F_HID)
    mid_layer = init_bayesian_linear(km, F_HID, F_HID)
    layer_2 = init_bayesian_linear(k2, F_HID, N_CLASSES)
    eps_1, eps_m, eps_2 = sample_eps(k_eps, layer_1, mid_layer, layer_2)

    out = bayesian_mlp2_forward(x, layer_1, mid_layer, layer_2, eps_1, eps_m, eps_2)
    out = jax.block_until_ready(out)

    ref = _reference_forward(x, layer_1, mid_layer, layer_2, eps_1, eps_m, eps_2)

    # sanity: shape, finiteness, valid softmax, matches the same-precision reference
    assert out.shape == (B, N_CLASSES)
    assert bool(jnp.all(jnp.isfinite(out)))
    assert bool(jnp.all(out >= 0.0))
    assert bool(jnp.allclose(jnp.sum(out, axis=1), 1.0, atol=1e-3))
    assert bool(jnp.allclose(out, ref, atol=2e-2)), float(jnp.max(jnp.abs(out - ref)))

    print("KERNEL_OK")
</pallas_src>

<mosaic_0001>
module attributes {stable_mosaic.version = 11 : i64} {
  func.func @_bayesian_mlp2_kernel(%arg0: i32, %arg1: memref<64x128xbf16, #tpu.memory_space<vmem>>, %arg2: memref<128x128xf32, #tpu.memory_space<vmem>>, %arg3: memref<128x128xf32, #tpu.memory_space<vmem>>, %arg4: memref<128x128xf32, #tpu.memory_space<vmem>>, %arg5: memref<1x128xf32, #tpu.memory_space<vmem>>, %arg6: memref<1x128xf32, #tpu.memory_space<vmem>>, %arg7: memref<1x128xf32, #tpu.memory_space<vmem>>, %arg8: memref<128x128xf32, #tpu.memory_space<vmem>>, %arg9: memref<128x128xf32, #tpu.memory_space<vmem>>, %arg10: memref<128x128xf32, #tpu.memory_space<vmem>>, %arg11: memref<1x128xf32, #tpu.memory_space<vmem>>, %arg12: memref<1x128xf32, #tpu.memory_space<vmem>>, %arg13: memref<1x128xf32, #tpu.memory_space<vmem>>, %arg14: memref<128x128xf32, #tpu.memory_space<vmem>>, %arg15: memref<128x128xf32, #tpu.memory_space<vmem>>, %arg16: memref<128x128xf32, #tpu.memory_space<vmem>>, %arg17: memref<1x128xf32, #tpu.memory_space<vmem>>, %arg18: memref<1x128xf32, #tpu.memory_space<vmem>>, %arg19: memref<1x128xf32, #tpu.memory_space<vmem>>, %arg20: memref<64x128xf32, #tpu.memory_space<vmem>>) attributes {dimension_semantics = [#tpu.dimension_semantics<arbitrary>], iteration_bounds = array<i64: 1>, scalar_prefetch = 0 : i64, scratch_operands = 0 : i64, tpu.core_type = #tpu.core_type<tc>, window_params = [{transform_indices = @transform_0, window_bounds = array<i64: 64, 128>}, {pipeline_mode = #tpu.pipeline_mode<synchronous>, transform_indices = @transform_1, window_bounds = array<i64: 128, 128>}, {pipeline_mode = #tpu.pipeline_mode<synchronous>, transform_indices = @transform_2, window_bounds = array<i64: 128, 128>}, {pipeline_mode = #tpu.pipeline_mode<synchronous>, transform_indices = @transform_3, window_bounds = array<i64: 128, 128>}, {pipeline_mode = #tpu.pipeline_mode<synchronous>, transform_indices = @transform_4, window_bounds = array<i64: 1, 128>}, {pipeline_mode = #tpu.pipeline_mode<synchronous>, transform_indices = @transform_5, window_bounds = array<i64: 1, 128>}, {pipeline_mode = #tpu.pipeline_mode<synchronous>, transform_indices = @transform_6, window_bounds = array<i64: 1, 128>}, {pipeline_mode = #tpu.pipeline_mode<synchronous>, transform_indices = @transform_7, window_bounds = array<i64: 128, 128>}, {pipeline_mode = #tpu.pipeline_mode<synchronous>, transform_indices = @transform_8, window_bounds = array<i64: 128, 128>}, {pipeline_mode = #tpu.pipeline_mode<synchronous>, transform_indices = @transform_9, window_bounds = array<i64: 128, 128>}, {pipeline_mode = #tpu.pipeline_mode<synchronous>, transform_indices = @transform_10, window_bounds = array<i64: 1, 128>}, {pipeline_mode = #tpu.pipeline_mode<synchronous>, transform_indices = @transform_11, window_bounds = array<i64: 1, 128>}, {pipeline_mode = #tpu.pipeline_mode<synchronous>, transform_indices = @transform_12, window_bounds = array<i64: 1, 128>}, {pipeline_mode = #tpu.pipeline_mode<synchronous>, transform_indices = @transform_13, window_bounds = array<i64: 128, 128>}, {pipeline_mode = #tpu.pipeline_mode<synchronous>, transform_indices = @transform_14, window_bounds = array<i64: 128, 128>}, {pipeline_mode = #tpu.pipeline_mode<synchronous>, transform_indices = @transform_15, window_bounds = array<i64: 128, 128>}, {pipeline_mode = #tpu.pipeline_mode<synchronous>, transform_indices = @transform_16, window_bounds = array<i64: 1, 128>}, {pipeline_mode = #tpu.pipeline_mode<synchronous>, transform_indices = @transform_17, window_bounds = array<i64: 1, 128>}, {pipeline_mode = #tpu.pipeline_mode<synchronous>, transform_indices = @transform_18, window_bounds = array<i64: 1, 128>}, {transform_indices = @transform_19, window_bounds = array<i64: 64, 128>}]} {
    %c0 = arith.constant 0 : index
    %c0_0 = arith.constant 0 : index
    %0 = vector.load %arg1[%c0, %c0_0] : memref<64x128xbf16, #tpu.memory_space<vmem>>, vector<64x128xbf16>
    %c0_1 = arith.constant 0 : index
    %c0_2 = arith.constant 0 : index
    %1 = vector.load %arg2[%c0_1, %c0_2] : memref<128x128xf32, #tpu.memory_space<vmem>>, vector<128x128xf32>
    %c0_3 = arith.constant 0 : index
    %c0_4 = arith.constant 0 : index
    %2 = vector.load %arg3[%c0_3, %c0_4] : memref<128x128xf32, #tpu.memory_space<vmem>>, vector<128x128xf32>
    %cst = arith.constant 0.000000e+00 : f32
    %3 = vector.broadcast %cst : f32 to vector<128x128xf32>
    %4 = arith.maximumf %2, %3 : vector<128x128xf32>
    %5 = math.absf %2 : vector<128x128xf32>
    %cst_5 = arith.constant 0.000000e+00 : f32
    %6 = vector.broadcast %cst_5 : f32 to vector<128x128xf32>
    %7 = arith.subf %6, %5 : vector<128x128xf32>
    %8 = math.exp %7 : vector<128x128xf32>
    %9 = math.log1p %8 : vector<128x128xf32>
    %10 = arith.addf %4, %9 : vector<128x128xf32>
    %c0_6 = arith.constant 0 : index
    %c0_7 = arith.constant 0 : index
    %11 = vector.load %arg4[%c0_6, %c0_7] : memref<128x128xf32, #tpu.memory_space<vmem>>, vector<128x128xf32>
    %12 = arith.mulf %10, %11 : vector<128x128xf32>
    %13 = arith.addf %1, %12 : vector<128x128xf32>
    %14 = arith.truncf %13 : vector<128x128xf32> to vector<128x128xbf16>
    %cst_8 = arith.constant dense<0.000000e+00> : vector<64x128xf32>
    %15 = tpu.matmul %0, %14, %cst_8 {dimension_numbers = #tpu.dot_dimension_numbers<[1], [0], [0], [1], [0, 0, 1, 1], [], []>} : vector<64x128xbf16>, vector<128x128xbf16>, vector<64x128xf32> -> vector<64x128xf32>
    %c0_9 = arith.constant 0 : index
    %c0_10 = arith.constant 0 : index
    %16 = vector.load %arg5[%c0_9, %c0_10] : memref<1x128xf32, #tpu.memory_space<vmem>>, vector<1x128xf32>
    %c0_11 = arith.constant 0 : index
    %c0_12 = arith.constant 0 : index
    %17 = vector.load %arg6[%c0_11, %c0_12] : memref<1x128xf32, #tpu.memory_space<vmem>>, vector<1x128xf32>
    %cst_13 = arith.constant 0.000000e+00 : f32
    %18 = vector.broadcast %cst_13 : f32 to vector<1x128xf32>
    %19 = arith.maximumf %17, %18 : vector<1x128xf32>
    %20 = math.absf %17 : vector<1x128xf32>
    %cst_14 = arith.constant 0.000000e+00 : f32
    %21 = vector.broadcast %cst_14 : f32 to vector<1x128xf32>
    %22 = arith.subf %21, %20 : vector<1x128xf32>
    %23 = math.exp %22 : vector<1x128xf32>
    %24 = math.log1p %23 : vector<1x128xf32>
    %25 = arith.addf %19, %24 : vector<1x128xf32>
    %c0_15 = arith.constant 0 : index
    %c0_16 = arith.constant 0 : index
    %26 = vector.load %arg7[%c0_15, %c0_16] : memref<1x128xf32, #tpu.memory_space<vmem>>, vector<1x128xf32>
    %27 = arith.mulf %25, %26 : vector<1x128xf32>
    %28 = arith.addf %16, %27 : vector<1x128xf32>
    %29 = vector.broadcast %28 : vector<1x128xf32> to vector<64x128xf32>
    %30 = arith.addf %15, %29 : vector<64x128xf32>
    %31 = arith.negf %30 : vector<64x128xf32>
    %32 = math.exp %31 : vector<64x128xf32>
    %cst_17 = arith.constant 1.000000e+00 : f32
    %33 = vector.broadcast %cst_17 : f32 to vector<64x128xf32>
    %34 = arith.addf %33, %32 : vector<64x128xf32>
    %35 = arith.divf %33, %34 : vector<64x128xf32>
    %36 = arith.truncf %35 : vector<64x128xf32> to vector<64x128xbf16>
    %c0_18 = arith.constant 0 : index
    %c0_19 = arith.constant 0 : index
    %37 = vector.load %arg8[%c0_18, %c0_19] : memref<128x128xf32, #tpu.memory_space<vmem>>, vector<128x128xf32>
    %c0_20 = arith.constant 0 : index
    %c0_21 = arith.constant 0 : index
    %38 = vector.load %arg9[%c0_20, %c0_21] : memref<128x128xf32, #tpu.memory_space<vmem>>, vector<128x128xf32>
    %cst_22 = arith.constant 0.000000e+00 : f32
    %39 = vector.broadcast %cst_22 : f32 to vector<128x128xf32>
    %40 = arith.maximumf %38, %39 : vector<128x128xf32>
    %41 = math.absf %38 : vector<128x128xf32>
    %cst_23 = arith.constant 0.000000e+00 : f32
    %42 = vector.broadcast %cst_23 : f32 to vector<128x128xf32>
    %43 = arith.subf %42, %41 : vector<128x128xf32>
    %44 = math.exp %43 : vector<128x128xf32>
    %45 = math.log1p %44 : vector<128x128xf32>
    %46 = arith.addf %40, %45 : vector<128x128xf32>
    %c0_24 = arith.constant 0 : index
    %c0_25 = arith.constant 0 : index
    %47 = vector.load %arg10[%c0_24, %c0_25] : memref<128x128xf32, #tpu.memory_space<vmem>>, vector<128x128xf32>
    %48 = arith.mulf %46, %47 : vector<128x128xf32>
    %49 = arith.addf %37, %48 : vector<128x128xf32>
    %50 = arith.truncf %49 : vector<128x128xf32> to vector<128x128xbf16>
    %cst_26 = arith.constant dense<0.000000e+00> : vector<64x128xf32>
    %51 = tpu.matmul %36, %50, %cst_26 {dimension_numbers = #tpu.dot_dimension_numbers<[1], [0], [0], [1], [0, 0, 1, 1], [], []>} : vector<64x128xbf16>, vector<128x128xbf16>, vector<64x128xf32> -> vector<64x128xf32>
    %c0_27 = arith.constant 0 : index
    %c0_28 = arith.constant 0 : index
    %52 = vector.load %arg11[%c0_27, %c0_28] : memref<1x128xf32, #tpu.memory_space<vmem>>, vector<1x128xf32>
    %c0_29 = arith.constant 0 : index
    %c0_30 = arith.constant 0 : index
    %53 = vector.load %arg12[%c0_29, %c0_30] : memref<1x128xf32, #tpu.memory_space<vmem>>, vector<1x128xf32>
    %cst_31 = arith.constant 0.000000e+00 : f32
    %54 = vector.broadcast %cst_31 : f32 to vector<1x128xf32>
    %55 = arith.maximumf %53, %54 : vector<1x128xf32>
    %56 = math.absf %53 : vector<1x128xf32>
    %cst_32 = arith.constant 0.000000e+00 : f32
    %57 = vector.broadcast %cst_32 : f32 to vector<1x128xf32>
    %58 = arith.subf %57, %56 : vector<1x128xf32>
    %59 = math.exp %58 : vector<1x128xf32>
    %60 = math.log1p %59 : vector<1x128xf32>
    %61 = arith.addf %55, %60 : vector<1x128xf32>
    %c0_33 = arith.constant 0 : index
    %c0_34 = arith.constant 0 : index
    %62 = vector.load %arg13[%c0_33, %c0_34] : memref<1x128xf32, #tpu.memory_space<vmem>>, vector<1x128xf32>
    %63 = arith.mulf %61, %62 : vector<1x128xf32>
    %64 = arith.addf %52, %63 : vector<1x128xf32>
    %65 = vector.broadcast %64 : vector<1x128xf32> to vector<64x128xf32>
    %66 = arith.addf %51, %65 : vector<64x128xf32>
    %67 = arith.negf %66 : vector<64x128xf32>
    %68 = math.exp %67 : vector<64x128xf32>
    %cst_35 = arith.constant 1.000000e+00 : f32
    %69 = vector.broadcast %cst_35 : f32 to vector<64x128xf32>
    %70 = arith.addf %69, %68 : vector<64x128xf32>
    %71 = arith.divf %69, %70 : vector<64x128xf32>
    %72 = arith.truncf %71 : vector<64x128xf32> to vector<64x128xbf16>
    %c0_36 = arith.constant 0 : index
    %c0_37 = arith.constant 0 : index
    %73 = vector.load %arg14[%c0_36, %c0_37] : memref<128x128xf32, #tpu.memory_space<vmem>>, vector<128x128xf32>
    %c0_38 = arith.constant 0 : index
    %c0_39 = arith.constant 0 : index
    %74 = vector.load %arg15[%c0_38, %c0_39] : memref<128x128xf32, #tpu.memory_space<vmem>>, vector<128x128xf32>
    %cst_40 = arith.constant 0.000000e+00 : f32
    %75 = vector.broadcast %cst_40 : f32 to vector<128x128xf32>
    %76 = arith.maximumf %74, %75 : vector<128x128xf32>
    %77 = math.absf %74 : vector<128x128xf32>
    %cst_41 = arith.constant 0.000000e+00 : f32
    %78 = vector.broadcast %cst_41 : f32 to vector<128x128xf32>
    %79 = arith.subf %78, %77 : vector<128x128xf32>
    %80 = math.exp %79 : vector<128x128xf32>
    %81 = math.log1p %80 : vector<128x128xf32>
    %82 = arith.addf %76, %81 : vector<128x128xf32>
    %c0_42 = arith.constant 0 : index
    %c0_43 = arith.constant 0 : index
    %83 = vector.load %arg16[%c0_42, %c0_43] : memref<128x128xf32, #tpu.memory_space<vmem>>, vector<128x128xf32>
    %84 = arith.mulf %82, %83 : vector<128x128xf32>
    %85 = arith.addf %73, %84 : vector<128x128xf32>
    %86 = arith.truncf %85 : vector<128x128xf32> to vector<128x128xbf16>
    %cst_44 = arith.constant dense<0.000000e+00> : vector<64x128xf32>
    %87 = tpu.matmul %72, %86, %cst_44 {dimension_numbers = #tpu.dot_dimension_numbers<[1], [0], [0], [1], [0, 0, 1, 1], [], []>} : vector<64x128xbf16>, vector<128x128xbf16>, vector<64x128xf32> -> vector<64x128xf32>
    %c0_45 = arith.constant 0 : index
    %c0_46 = arith.constant 0 : index
    %88 = vector.load %arg17[%c0_45, %c0_46] : memref<1x128xf32, #tpu.memory_space<vmem>>, vector<1x128xf32>
    %c0_47 = arith.constant 0 : index
    %c0_48 = arith.constant 0 : index
    %89 = vector.load %arg18[%c0_47, %c0_48] : memref<1x128xf32, #tpu.memory_space<vmem>>, vector<1x128xf32>
    %cst_49 = arith.constant 0.000000e+00 : f32
    %90 = vector.broadcast %cst_49 : f32 to vector<1x128xf32>
    %91 = arith.maximumf %89, %90 : vector<1x128xf32>
    %92 = math.absf %89 : vector<1x128xf32>
    %cst_50 = arith.constant 0.000000e+00 : f32
    %93 = vector.broadcast %cst_50 : f32 to vector<1x128xf32>
    %94 = arith.subf %93, %92 : vector<1x128xf32>
    %95 = math.exp %94 : vector<1x128xf32>
    %96 = math.log1p %95 : vector<1x128xf32>
    %97 = arith.addf %91, %96 : vector<1x128xf32>
    %c0_51 = arith.constant 0 : index
    %c0_52 = arith.constant 0 : index
    %98 = vector.load %arg19[%c0_51, %c0_52] : memref<1x128xf32, #tpu.memory_space<vmem>>, vector<1x128xf32>
    %99 = arith.mulf %97, %98 : vector<1x128xf32>
    %100 = arith.addf %88, %99 : vector<1x128xf32>
    %101 = vector.broadcast %100 : vector<1x128xf32> to vector<64x128xf32>
    %102 = arith.addf %87, %101 : vector<64x128xf32>
    %cst_53 = arith.constant dense<0xFF800000> : vector<64xf32>
    %103 = vector.multi_reduction <maximumf>, %102, %cst_53 [1] : vector<64x128xf32> to vector<64xf32>
    %104 = vector.shape_cast %103 : vector<64xf32> to vector<64x1xf32>
    %105 = vector.broadcast %104 : vector<64x1xf32> to vector<64x128xf32>
    %106 = arith.subf %102, %105 : vector<64x128xf32>
    %107 = math.exp %106 : vector<64x128xf32>
    %cst_54 = arith.constant dense<0.000000e+00> : vector<64xf32>
    %108 = vector.multi_reduction <add>, %107, %cst_54 [1] : vector<64x128xf32> to vector<64xf32>
    %109 = vector.shape_cast %108 : vector<64xf32> to vector<64x1xf32>
    %110 = vector.broadcast %109 : vector<64x1xf32> to vector<64x128xf32>
    %111 = arith.divf %107, %110 : vector<64x128xf32>
    %c0_55 = arith.constant 0 : index
    %c0_56 = arith.constant 0 : index
    %112 = vector.load %arg20[%c0_55, %c0_56] : memref<64x128xf32, #tpu.memory_space<vmem>>, vector<64x128xf32>
    tpu.vector_store %arg20[%c0_55, %c0_56], %111 {strides = array<i32>} : memref<64x128xf32, #tpu.memory_space<vmem>>, vector<64x128xf32>,
    return
  }
  func.func @transform_0(%arg0: i32) -> (i32, i32) {
    %c0_i32 = arith.constant 0 : i32
    %c0_i32_0 = arith.constant 0 : i32
    return %arg0, %c0_i32 : i32, i32
  }
  func.func @transform_1(%arg0: i32) -> (i32, i32) {
    %c0_i32 = arith.constant 0 : i32
    %c0_i32_0 = arith.constant 0 : i32
    %c0_i32_1 = arith.constant 0 : i32
    return %c0_i32, %c0_i32_0 : i32, i32
  }
  func.func @transform_2(%arg0: i32) -> (i32, i32) {
    %c0_i32 = arith.constant 0 : i32
    %c0_i32_0 = arith.constant 0 : i32
    %c0_i32_1 = arith.constant 0 : i32
    return %c0_i32, %c0_i32_0 : i32, i32
  }
  func.func @transform_3(%arg0: i32) -> (i32, i32) {
    %c0_i32 = arith.constant 0 : i32
    %c0_i32_0 = arith.constant 0 : i32
    %c0_i32_1 = arith.constant 0 : i32
    return %c0_i32, %c0_i32_0 : i32, i32
  }
  func.func @transform_4(%arg0: i32) -> (i32, i32) {
    %c0_i32 = arith.constant 0 : i32
    %c0_i32_0 = arith.constant 0 : i32
    %c0_i32_1 = arith.constant 0 : i32
    return %c0_i32, %c0_i32_0 : i32, i32
  }
  func.func @transform_5(%arg0: i32) -> (i32, i32) {
    %c0_i32 = arith.constant 0 : i32
    %c0_i32_0 = arith.constant 0 : i32
    %c0_i32_1 = arith.constant 0 : i32
    return %c0_i32, %c0_i32_0 : i32, i32
  }
  func.func @transform_6(%arg0: i32) -> (i32, i32) {
    %c0_i32 = arith.constant 0 : i32
    %c0_i32_0 = arith.constant 0 : i32
    %c0_i32_1 = arith.constant 0 : i32
    return %c0_i32, %c0_i32_0 : i32, i32
  }
  func.func @transform_7(%arg0: i32) -> (i32, i32) {
    %c0_i32 = arith.constant 0 : i32
    %c0_i32_0 = arith.constant 0 : i32
    %c0_i32_1 = arith.constant 0 : i32
    return %c0_i32, %c0_i32_0 : i32, i32
  }
  func.func @transform_8(%arg0: i32) -> (i32, i32) {
    %c0_i32 = arith.constant 0 : i32
    %c0_i32_0 = arith.constant 0 : i32
    %c0_i32_1 = arith.constant 0 : i32
    return %c0_i32, %c0_i32_0 : i32, i32
  }
  func.func @transform_9(%arg0: i32) -> (i32, i32) {
    %c0_i32 = arith.constant 0 : i32
    %c0_i32_0 = arith.constant 0 : i32
    %c0_i32_1 = arith.constant 0 : i32
    return %c0_i32, %c0_i32_0 : i32, i32
  }
  func.func @transform_10(%arg0: i32) -> (i32, i32) {
    %c0_i32 = arith.constant 0 : i32
    %c0_i32_0 = arith.constant 0 : i32
    %c0_i32_1 = arith.constant 0 : i32
    return %c0_i32, %c0_i32_0 : i32, i32
  }
  func.func @transform_11(%arg0: i32) -> (i32, i32) {
    %c0_i32 = arith.constant 0 : i32
    %c0_i32_0 = arith.constant 0 : i32
    %c0_i32_1 = arith.constant 0 : i32
    return %c0_i32, %c0_i32_0 : i32, i32
  }
  func.func @transform_12(%arg0: i32) -> (i32, i32) {
    %c0_i32 = arith.constant 0 : i32
    %c0_i32_0 = arith.constant 0 : i32
    %c0_i32_1 = arith.constant 0 : i32
    return %c0_i32, %c0_i32_0 : i32, i32
  }
  func.func @transform_13(%arg0: i32) -> (i32, i32) {
    %c0_i32 = arith.constant 0 : i32
    %c0_i32_0 = arith.constant 0 : i32
    %c0_i32_1 = arith.constant 0 : i32
    return %c0_i32, %c0_i32_0 : i32, i32
  }
  func.func @transform_14(%arg0: i32) -> (i32, i32) {
    %c0_i32 = arith.constant 0 : i32
    %c0_i32_0 = arith.constant 0 : i32
    %c0_i32_1 = arith.constant 0 : i32
    return %c0_i32, %c0_i32_0 : i32, i32
  }
  func.func @transform_15(%arg0: i32) -> (i32, i32) {
    %c0_i32 = arith.constant 0 : i32
    %c0_i32_0 = arith.constant 0 : i32
    %c0_i32_1 = arith.constant 0 : i32
    return %c0_i32, %c0_i32_0 : i32, i32
  }
  func.func @transform_16(%arg0: i32) -> (i32, i32) {
    %c0_i32 = arith.constant 0 : i32
    %c0_i32_0 = arith.constant 0 : i32
    %c0_i32_1 = arith.constant 0 : i32
    return %c0_i32, %c0_i32_0 : i32, i32
  }
  func.func @transform_17(%arg0: i32) -> (i32, i32) {
    %c0_i32 = arith.constant 0 : i32
    %c0_i32_0 = arith.constant 0 : i32
    %c0_i32_1 = arith.constant 0 : i32
    return %c0_i32, %c0_i32_0 : i32, i32
  }
  func.func @transform_18(%arg0: i32) -> (i32, i32) {
    %c0_i32 = arith.constant 0 : i32
    %c0_i32_0 = arith.constant 0 : i32
    %c0_i32_1 = arith.constant 0 : i32
    return %c0_i32, %c0_i32_0 : i32, i32
  }
  func.func @transform_19(%arg0: i32) -> (i32, i32) {
    %c0_i32 = arith.constant 0 : i32
    %c0_i32_0 = arith.constant 0 : i32
    return %arg0, %c0_i32 : i32, i32
  }
}

</mosaic_0001>

<llo_original>
// kernel: tpu_custom_call.1
$region0: #{tpu_custom_call.1}
  #allocation0 [shape = 'u32[]', space=smem, size = 0x4, offset = 0x4, fixed_abs, tag = 'smem constant byte address 0x4 - core index']
  #allocation1 [shape = 'u32[72,128]{1,0:T(1,128)}', space=vmem, size = 0x9000, scoped, tag = 'internal scratch']
  %s0 = inlined_call_operand.hbm [shape: bf16[64,128], index: 0, kind: input, shape index: {}]
  %s1 = inlined_call_operand.hbm [shape: f32[128,128], index: 1, kind: input, shape index: {}]
  %s2 = inlined_call_operand.hbm [shape: f32[128,128], index: 2, kind: input, shape index: {}]
  %s3 = inlined_call_operand.hbm [shape: f32[128,128], index: 3, kind: input, shape index: {}]
  %s4 = inlined_call_operand.vmem [shape: f32[1,128], index: 4, kind: input, shape index: {}]
  %s5 = inlined_call_operand.vmem [shape: f32[1,128], index: 5, kind: input, shape index: {}]
  %s6 = inlined_call_operand.vmem [shape: f32[1,128], index: 6, kind: input, shape index: {}]
  %s7 = inlined_call_operand.hbm [shape: f32[128,128], index: 7, kind: input, shape index: {}]
  %s8 = inlined_call_operand.hbm [shape: f32[128,128], index: 8, kind: input, shape index: {}]
  %s9 = inlined_call_operand.hbm [shape: f32[128,128], index: 9, kind: input, shape index: {}]
  %s10 = inlined_call_operand.vmem [shape: f32[1,128], index: 10, kind: input, shape index: {}]
  %s11 = inlined_call_operand.vmem [shape: f32[1,128], index: 11, kind: input, shape index: {}]
  %s12 = inlined_call_operand.vmem [shape: f32[1,128], index: 12, kind: input, shape index: {}]
  %s13 = inlined_call_operand.hbm [shape: f32[128,128], index: 13, kind: input, shape index: {}]
  %s14 = inlined_call_operand.hbm [shape: f32[128,128], index: 14, kind: input, shape index: {}]
  %s15 = inlined_call_operand.hbm [shape: f32[128,128], index: 15, kind: input, shape index: {}]
  %s16 = inlined_call_operand.vmem [shape: f32[1,128], index: 16, kind: input, shape index: {}]
  %s17 = inlined_call_operand.vmem [shape: f32[1,128], index: 17, kind: input, shape index: {}]
  %s18 = inlined_call_operand.vmem [shape: f32[1,128], index: 18, kind: input, shape index: {}]
  %s19 = inlined_call_operand.hbm [shape: f32[64,128], index: 19, kind: output, shape index: {}]
  %s20 = sld [smem:[#allocation0]]
  $region126: #{tpu_custom_call.1} parent=0
    _
  %s22 = ssub.s32 1, %s20
  %s23 = scalar_select 0, %s22, %s20
  $region1: #{tpu_custom_call.1} parent=0
    #allocation2 [shape = 'u8[16384]{0}', space=vmem, size = 0x4000, scoped, tag = 'input window, operand 0, single buffered']
    #allocation3 [shape = 's32[1]{0}', space=sflag, size = 0x4, scoped, tag = 'scoped memory for tpu_custom_call.1']
    #allocation4 [shape = 's32[1]{0}', space=sflag, size = 0x4, scoped, tag = 'scoped memory for tpu_custom_call.1']
    #allocation5 [shape = 'u8[65536]{0}', space=vmem, size = 0x10000, scoped, tag = 'input window, operand 1, single buffered']
    #allocation6 [shape = 's32[1]{0}', space=sflag, size = 0x4, scoped, tag = 'scoped memory for tpu_custom_call.1']
    #allocation7 [shape = 'u8[65536]{0}', space=vmem, size = 0x10000, scoped, tag = 'input window, operand 2, single buffered']
    #allocation8 [shape = 'u8[65536]{0}', space=vmem, size = 0x10000, scoped, tag = 'input window, operand 3, single buffered']
    #allocation9 [shape = 's32[1]{0}', space=sflag, size = 0x4, scoped, tag = 'scoped memory for tpu_custom_call.1']
    #allocation10 [shape = 'u8[65536]{0}', space=vmem, size = 0x10000, scoped, tag = 'input window, operand 7, single buffered']
    #allocation11 [shape = 'u8[65536]{0}', space=vmem, size = 0x10000, scoped, tag = 'input window, operand 8, single buffered']
    #allocation12 [shape = 's32[1]{0}', space=sflag, size = 0x4, scoped, tag = 'scoped memory for tpu_custom_call.1']
    #allocation13 [shape = 'u8[65536]{0}', space=vmem, size = 0x10000, scoped, tag = 'input window, operand 9, single buffered']
    #allocation14 [shape = 'u8[65536]{0}', space=vmem, size = 0x10000, scoped, tag = 'input window, operand 13, single buffered']
    #allocation15 [shape = 's32[1]{0}', space=sflag, size = 0x4, scoped, tag = 'scoped memory for tpu_custom_call.1']
    #allocation16 [shape = 'u8[65536]{0}', space=vmem, size = 0x10000, scoped, tag = 'input window, operand 14, single buffered']
    #allocation17 [shape = 'u8[65536]{0}', space=vmem, size = 0x10000, scoped, tag = 'input window, operand 15, single buffered']
    #allocation18 [shape = 's32[1]{0}', space=sflag, size = 0x4, scoped, tag = 'scoped memory for tpu_custom_call.1']
    #allocation19 [shape = 'u8[32768]{0}', space=vmem, size = 0x8000, scoped, tag = 'output window, operand 0, single buffered']
    %24 = vsyncpa [#allocation3], 0
    %25 = vsyncpa [#allocation6], 0
    %26 = vsyncpa [#allocation9], 0
    %27 = vsyncpa [#allocation12], 0
    %28 = vsyncpa [#allocation15], 0
    %29 = vsyncpa [#allocation18], 0
    %30 = vsyncpa [#allocation4], 0
    // Predicated region
    $region2: #{tpu_custom_call.1} parent=1 // pred_check
      _
    $region3: #{tpu_custom_call.1} parent=1 // pred_check_branch
      %32 = sbr.rel (0) target = $region5
    $region4: #{tpu_custom_call.1} parent=1 // pred_region
      %34 = vsyncadd [#allocation3], 0
      %s35 = sshll.u32 %s0, 4
      %s36 = int_to_ptr.hbm [resolvable:$true] %s35
      %s37 = sshll.u32 [#allocation2], 4
      %s38 = int_to_ptr.vmem [resolvable:$true] %s37
      %43 = dma.hbm_to_vmem [thread:$0]  %s36, 512, %s38, [#allocation3], 64, 64, 4
    $region5: #{tpu_custom_call.1} parent=1 // pred_fallthru
      _
    // Predicated region
    $region6: #{tpu_custom_call.1} parent=1 // pred_check
      _
    $region7: #{tpu_custom_call.1} parent=1 // pred_check_branch
      %45 = sbr.rel (0) target = $region9
    $region8: #{tpu_custom_call.1} parent=1 // pred_region
      %47 = vsyncadd [#allocation6], 0
      %s48 = sshll.u32 %s1, 4
      %s49 = int_to_ptr.hbm [resolvable:$true] %s48
      %s50 = sshll.u32 [#allocation5], 4
      %s51 = int_to_ptr.vmem [resolvable:$true] %s50
      %56 = dma.hbm_to_vmem [thread:$0]  %s49, 2048, %s51, [#allocation6], 128, 128, 8
    $region9: #{tpu_custom_call.1} parent=1 // pred_fallthru
      _
    // Predicated region
    $region10: #{tpu_custom_call.1} parent=1 // pred_check
      _
    $region11: #{tpu_custom_call.1} parent=1 // pred_check_branch
      %58 = sbr.rel (0) target = $region13
    $region12: #{tpu_custom_call.1} parent=1 // pred_region
      %60 = vsyncadd [#allocation6], 0
      %s61 = sshll.u32 %s2, 4
      %s62 = int_to_ptr.hbm [resolvable:$true] %s61
      %s63 = sshll.u32 [#allocation7], 4
      %s64 = int_to_ptr.vmem [resolvable:$true] %s63
      %69 = dma.hbm_to_vmem [thread:$0]  %s62, 2048, %s64, [#allocation6], 128, 128, 8
    $region13: #{tpu_custom_call.1} parent=1 // pred_fallthru
      _
    // Predicated region
    $region14: #{tpu_custom_call.1} parent=1 // pred_check
      _
    $region15: #{tpu_custom_call.1} parent=1 // pred_check_branch
      %71 = sbr.rel (0) target = $region17
    $region16: #{tpu_custom_call.1} parent=1 // pred_region
      %73 = vsyncadd [#allocation9], 0
      %s74 = sshll.u32 %s3, 4
      %s75 = int_to_ptr.hbm [resolvable:$true] %s74
      %s76 = sshll.u32 [#allocation8], 4
      %s77 = int_to_ptr.vmem [resolvable:$true] %s76
      %82 = dma.hbm_to_vmem [thread:$0]  %s75, 2048, %s77, [#allocation9], 128, 128, 8
    $region17: #{tpu_custom_call.1} parent=1 // pred_fallthru
      _
    // Predicated region
    $region18: #{tpu_custom_call.1} parent=1 // pred_check
      _
    $region19: #{tpu_custom_call.1} parent=1 // pred_check_branch
      %84 = sbr.rel (0) target = $region21
    $region20: #{tpu_custom_call.1} parent=1 // pred_region
      _
    $region21: #{tpu_custom_call.1} parent=1 // pred_fallthru
      _
    // Predicated region
    $region22: #{tpu_custom_call.1} parent=1 // pred_check
      _
    $region23: #{tpu_custom_call.1} parent=1 // pred_check_branch
      %86 = sbr.rel (0) target = $region25
    $region24: #{tpu_custom_call.1} parent=1 // pred_region
      _
    $region25: #{tpu_custom_call.1} parent=1 // pred_fallthru
      _
    // Predicated region
    $region26: #{tpu_custom_call.1} parent=1 // pred_check
      _
    $region27: #{tpu_custom_call.1} parent=1 // pred_check_branch
      %88 = sbr.rel (0) target = $region29
    $region28: #{tpu_custom_call.1} parent=1 // pred_region
      _
    $region29: #{tpu_custom_call.1} parent=1 // pred_fallthru
      _
    // Predicated region
    $region30: #{tpu_custom_call.1} parent=1 // pred_check
      _
    $region31: #{tpu_custom_call.1} parent=1 // pred_check_branch
      %90 = sbr.rel (0) target = $region33
    $region32: #{tpu_custom_call.1} parent=1 // pred_region
      %92 = vsyncadd [#allocation9], 0
      %s93 = sshll.u32 %s7, 4
      %s94 = int_to_ptr.hbm [resolvable:$true] %s93
      %s95 = sshll.u32 [#allocation10], 4
      %s96 = int_to_ptr.vmem [resolvable:$true] %s95
      %101 = dma.hbm_to_vmem [thread:$0]  %s94, 2048, %s96, [#allocation9], 128, 128, 8
    $region33: #{tpu_custom_call.1} parent=1 // pred_fallthru
      _
    // Predicated region
    $region34: #{tpu_custom_call.1} parent=1 // pred_check
      _
    $region35: #{tpu_custom_call.1} parent=1 // pred_check_branch
      %103 = sbr.rel (0) target = $region37
    $region36: #{tpu_custom_call.1} parent=1 // pred_region
      %105 = vsyncadd [#allocation12], 0
      %s106 = sshll.u32 %s8, 4
      %s107 = int_to_ptr.hbm [resolvable:$true] %s106
      %s108 = sshll.u32 [#allocation11], 4
      %s109 = int_to_ptr.vmem [resolvable:$true] %s108
      %114 = dma.hbm_to_vmem [thread:$0]  %s107, 2048, %s109, [#allocation12], 128, 128, 8
    $region37: #{tpu_custom_call.1} parent=1 // pred_fallthru
      _
    // Predicated region
    $region38: #{tpu_custom_call.1} parent=1 // pred_check
      _
    $region39: #{tpu_custom_call.1} parent=1 // pred_check_branch
      %116 = sbr.rel (0) target = $region41
    $region40: #{tpu_custom_call.1} parent=1 // pred_region
      %118 = vsyncadd [#allocation12], 0
      %s119 = sshll.u32 %s9, 4
      %s120 = int_to_ptr.hbm [resolvable:$true] %s119
      %s121 = sshll.u32 [#allocation13], 4
      %s122 = int_to_ptr.vmem [resolvable:$true] %s121
      %127 = dma.hbm_to_vmem [thread:$0]  %s120, 2048, %s122, [#allocation12], 128, 128, 8
    $region41: #{tpu_custom_call.1} parent=1 // pred_fallthru
      _
    // Predicated region
    $region42: #{tpu_custom_call.1} parent=1 // pred_check
      _
    $region43: #{tpu_custom_call.1} parent=1 // pred_check_branch
      %129 = sbr.rel (0) target = $region45
    $region44: #{tpu_custom_call.1} parent=1 // pred_region
      _
    $region45: #{tpu_custom_call.1} parent=1 // pred_fallthru
      _
    // Predicated region
    $region46: #{tpu_custom_call.1} parent=1 // pred_check
      _
    $region47: #{tpu_custom_call.1} parent=1 // pred_check_branch
      %131 = sbr.rel (0) target = $region49
    $region48: #{tpu_custom_call.1} parent=1 // pred_region
      _
    $region49: #{tpu_custom_call.1} parent=1 // pred_fallthru
      _
    // Predicated region
    $region50: #{tpu_custom_call.1} parent=1 // pred_check
      _
    $region51: #{tpu_custom_call.1} parent=1 // pred_check_branch
      %133 = sbr.rel (0) target = $region53
    $region52: #{tpu_custom_call.1} parent=1 // pred_region
      _
    $region53: #{tpu_custom_call.1} parent=1 // pred_fallthru
      _
    // Predicated region
    $region54: #{tpu_custom_call.1} parent=1 // pred_check
      _
    $region55: #{tpu_custom_call.1} parent=1 // pred_check_branch
      %135 = sbr.rel (0) target = $region57
    $region56: #{tpu_custom_call.1} parent=1 // pred_region
      %137 = vsyncadd [#allocation15], 0
      %s138 = sshll.u32 %s13, 4
      %s139 = int_to_ptr.hbm [resolvable:$true] %s138
      %s140 = sshll.u32 [#allocation14], 4
      %s141 = int_to_ptr.vmem [resolvable:$true] %s140
      %146 = dma.hbm_to_vmem [thread:$0]  %s139, 2048, %s141, [#allocation15], 128, 128, 8
    $region57: #{tpu_custom_call.1} parent=1 // pred_fallthru
      _
    // Predicated region
    $region58: #{tpu_custom_call.1} parent=1 // pred_check
      _
    $region59: #{tpu_custom_call.1} parent=1 // pred_check_branch
      %148 = sbr.rel (0) target = $region61
    $region60: #{tpu_custom_call.1} parent=1 // pred_region
      %150 = vsyncadd [#allocation15], 0
      %s151 = sshll.u32 %s14, 4
      %s152 = int_to_ptr.hbm [resolvable:$true] %s151
      %s153 = sshll.u32 [#allocation16], 4
      %s154 = int_to_ptr.vmem [resolvable:$true] %s153
      %159 = dma.hbm_to_vmem [thread:$0]  %s152, 2048, %s154, [#allocation15], 128, 128, 8
    $region61: #{tpu_custom_call.1} parent=1 // pred_fallthru
      _
    // Predicated region
    $region62: #{tpu_custom_call.1} parent=1 // pred_check
      _
    $region63: #{tpu_custom_call.1} parent=1 // pred_check_branch
      %161 = sbr.rel (0) target = $region65
    $region64: #{tpu_custom_call.1} parent=1 // pred_region
      %163 = vsyncadd [#allocation18], 0
      %s164 = sshll.u32 %s15, 4
      %s165 = int_to_ptr.hbm [resolvable:$true] %s164
      %s166 = sshll.u32 [#allocation17], 4
      %s167 = int_to_ptr.vmem [resolvable:$true] %s166
      %172 = dma.hbm_to_vmem [thread:$0]  %s165, 2048, %s167, [#allocation18], 128, 128, 8
    $region65: #{tpu_custom_call.1} parent=1 // pred_fallthru
      _
    // Predicated region
    $region66: #{tpu_custom_call.1} parent=1 // pred_check
      _
    $region67: #{tpu_custom_call.1} parent=1 // pred_check_branch
      %174 = sbr.rel (0) target = $region69
    $region68: #{tpu_custom_call.1} parent=1 // pred_region
      _
    $region69: #{tpu_custom_call.1} parent=1 // pred_fallthru
      _
    // Predicated region
    $region70: #{tpu_custom_call.1} parent=1 // pred_check
      _
    $region71: #{tpu_custom_call.1} parent=1 // pred_check_branch
      %176 = sbr.rel (0) target = $region73
    $region72: #{tpu_custom_call.1} parent=1 // pred_region
      _
    $region73: #{tpu_custom_call.1} parent=1 // pred_fallthru
      _
    // Predicated region
    $region74: #{tpu_custom_call.1} parent=1 // pred_check
      _
    $region75: #{tpu_custom_call.1} parent=1 // pred_check_branch
      %178 = sbr.rel (0) target = $region77
    $region76: #{tpu_custom_call.1} parent=1 // pred_region
      _
    $region77: #{tpu_custom_call.1} parent=1 // pred_fallthru
      _
    // Predicated region
    $region78: #{tpu_custom_call.1} parent=1 // pred_check
      _
    $region79: #{tpu_custom_call.1} parent=1 // pred_check_branch
      %180 = sbr.rel (0) target = $region81
    $region80: #{tpu_custom_call.1} parent=1 // pred_region
      %182 = dma.done [#allocation3], 512
    $region81: #{tpu_custom_call.1} parent=1 // pred_fallthru
      _
    // Predicated region
    $region82: #{tpu_custom_call.1} parent=1 // pred_check
      _
    $region83: #{tpu_custom_call.1} parent=1 // pred_check_branch
      %184 = sbr.rel (0) target = $region85
    $region84: #{tpu_custom_call.1} parent=1 // pred_region
      %186 = dma.done [#allocation6], 2048
    $region85: #{tpu_custom_call.1} parent=1 // pred_fallthru
      _
    // Predicated region
    $region86: #{tpu_custom_call.1} parent=1 // pred_check
      _
    $region87: #{tpu_custom_call.1} parent=1 // pred_check_branch
      %188 = sbr.rel (0) target = $region89
    $region88: #{tpu_custom_call.1} parent=1 // pred_region
      %190 = dma.done [#allocation6], 2048
    $region89: #{tpu_custom_call.1} parent=1 // pred_fallthru
      _
    // Predicated region
    $region90: #{tpu_custom_call.1} parent=1 // pred_check
      _
    $region91: #{tpu_custom_call.1} parent=1 // pred_check_branch
      %192 = sbr.rel (0) target = $region93
    $region92: #{tpu_custom_call.1} parent=1 // pred_region
      %194 = dma.done [#allocation9], 2048
    $region93: #{tpu_custom_call.1} parent=1 // pred_fallthru
      _
    // Predicated region
    $region94: #{tpu_custom_call.1} parent=1 // pred_check
      _
    $region95: #{tpu_custom_call.1} parent=1 // pred_check_branch
      %196 = sbr.rel (0) target = $region97
    $region96: #{tpu_custom_call.1} parent=1 // pred_region
      %198 = dma.done [#allocation9], 2048
    $region97: #{tpu_custom_call.1} parent=1 // pred_fallthru
      _
    // Predicated region
    $region98: #{tpu_custom_call.1} parent=1 // pred_check
      _
    $region99: #{tpu_custom_call.1} parent=1 // pred_check_branch
      %200 = sbr.rel (0) target = $region101
    $region100: #{tpu_custom_call.1} parent=1 // pred_region
      %202 = dma.done [#allocation12], 2048
    $region101: #{tpu_custom_call.1} parent=1 // pred_fallthru
      _
    // Predicated region
    $region102: #{tpu_custom_call.1} parent=1 // pred_check
      _
    $region103: #{tpu_custom_call.1} parent=1 // pred_check_branch
      %204 = sbr.rel (0) target = $region105
    $region104: #{tpu_custom_call.1} parent=1 // pred_region
      %206 = dma.done [#allocation12], 2048
    $region105: #{tpu_custom_call.1} parent=1 // pred_fallthru
      _
    // Predicated region
    $region106: #{tpu_custom_call.1} parent=1 // pred_check
      _
    $region107: #{tpu_custom_call.1} parent=1 // pred_check_branch
      %208 = sbr.rel (0) target = $region109
    $region108: #{tpu_custom_call.1} parent=1 // pred_region
      %210 = dma.done [#allocation15], 2048
    $region109: #{tpu_custom_call.1} parent=1 // pred_fallthru
      _
    // Predicated region
    $region110: #{tpu_custom_call.1} parent=1 // pred_check
      _
    $region111: #{tpu_custom_call.1} parent=1 // pred_check_branch
      %212 = sbr.rel (0) target = $region113
    $region112: #{tpu_custom_call.1} parent=1 // pred_region
      %214 = dma.done [#allocation15], 2048
    $region113: #{tpu_custom_call.1} parent=1 // pred_fallthru
      _
    // Predicated region
    $region114: #{tpu_custom_call.1} parent=1 // pred_check
      _
    $region115: #{tpu_custom_call.1} parent=1 // pred_check_branch
      %216 = sbr.rel (0) target = $region117
    $region116: #{tpu_custom_call.1} parent=1 // pred_region
      %218 = dma.done [#allocation18], 2048
    $region117: #{tpu_custom_call.1} parent=1 // pred_fallthru
      _
    %v219 = vld [vmem:[#allocation2] sm:$0xf]
    %v220 = vld [vmem:[#allocation2 + $0x4] sm:$0xf]
    %v221 = vld [vmem:[#allocation2 + $0x8] sm:$0xf]
    %v222 = vld [vmem:[#allocation2 + $0xc] sm:$0xf]
    %v223 = vld [vmem:[#allocation2 + $0x10] sm:$0xf]
    %v224 = vld [vmem:[#allocation2 + $0x14] sm:$0xf]
    %v225 = vld [vmem:[#allocation2 + $0x18] sm:$0xf]
    %v226 = vld [vmem:[#allocation2 + $0x1c] sm:$0xf]
    %v227 = vld [vmem:[#allocation5] sm:$0xff]
    %v228 = vld [vmem:[#allocation5 + $0x8] sm:$0xff]
    %v229 = vld [vmem:[#allocation5 + $0x10] sm:$0xff]
    %v230 = vld [vmem:[#allocation5 + $0x18] sm:$0xff]
    %v231 = vld [vmem:[#allocation5 + $0x20] sm:$0xff]
    %v232 = vld [vmem:[#allocation5 + $0x28] sm:$0xff]
    %v233 = vld [vmem:[#allocation5 + $0x30] sm:$0xff]
    %v234 = vld [vmem:[#allocation5 + $0x38] sm:$0xff]
    %v235 = vld [vmem:[#allocation5 + $0x40] sm:$0xff]
    %v236 = vld [vmem:[#allocation5 + $0x48] sm:$0xff]
    %v237 = vld [vmem:[#allocation5 + $0x50] sm:$0xff]
    %v238 = vld [vmem:[#allocation5 + $0x58] sm:$0xff]
    %v239 = vld [vmem:[#allocation5 + $0x60] sm:$0xff]
    %v240 = vld [vmem:[#allocation5 + $0x68] sm:$0xff]
    %v241 = vld [vmem:[#allocation5 + $0x70] sm:$0xff]
    %v242 = vld [vmem:[#allocation5 + $0x78] sm:$0xff]
    %v243 = vld [vmem:[#allocation7] sm:$0xff]
    %v244 = vld [vmem:[#allocation7 + $0x8] sm:$0xff]
    %v245 = vld [vmem:[#allocation7 + $0x10] sm:$0xff]
    %v246 = vld [vmem:[#allocation7 + $0x18] sm:$0xff]
    %v247 = vld [vmem:[#allocation7 + $0x20] sm:$0xff]
    %v248 = vld [vmem:[#allocation7 + $0x28] sm:$0xff]
    %v249 = vld [vmem:[#allocation7 + $0x30] sm:$0xff]
    %v250 = vld [vmem:[#allocation7 + $0x38] sm:$0xff]
    %v251 = vld [vmem:[#allocation7 + $0x40] sm:$0xff]
    %v252 = vld [vmem:[#allocation7 + $0x48] sm:$0xff]
    %v253 = vld [vmem:[#allocation7 + $0x50] sm:$0xff]
    %v254 = vld [vmem:[#allocation7 + $0x58] sm:$0xff]
    %v255 = vld [vmem:[#allocation7 + $0x60] sm:$0xff]
    %v256 = vld [vmem:[#allocation7 + $0x68] sm:$0xff]
    %v257 = vld [vmem:[#allocation7 + $0x70] sm:$0xff]
    %v258 = vld [vmem:[#allocation7 + $0x78] sm:$0xff]
    %v259 = vmax.f32 %v243, 0.0
    %v260 = vmax.f32 %v244, 0.0
    %v261 = vmax.f32 %v245, 0.0
    %v262 = vmax.f32 %v246, 0.0
    %v263 = vmax.f32 %v247, 0.0
    %v264 = vmax.f32 %v248, 0.0
    %v265 = vmax.f32 %v249, 0.0
    %v266 = vmax.f32 %v250, 0.0
    %v267 = vmax.f32 %v251, 0.0
    %v268 = vmax.f32 %v252, 0.0
    %v269 = vmax.f32 %v253, 0.0
    %v270 = vmax.f32 %v254, 0.0
    %v271 = vmax.f32 %v255, 0.0
    %v272 = vmax.f32 %v256, 0.0
    %v273 = vmax.f32 %v257, 0.0
    %v274 = vmax.f32 %v258, 0.0
    %v275 = vand.u32 2147483647, %v243
    %v276 = vand.u32 2147483647, %v244
    %v277 = vand.u32 2147483647, %v245
    %v278 = vand.u32 2147483647, %v246
    %v279 = vand.u32 2147483647, %v247
    %v280 = vand.u32 2147483647, %v248
    %v281 = vand.u32 2147483647, %v249
    %v282 = vand.u32 2147483647, %v250
    %v283 = vand.u32 2147483647, %v251
    %v284 = vand.u32 2147483647, %v252
    %v285 = vand.u32 2147483647, %v253
    %v286 = vand.u32 2147483647, %v254
    %v287 = vand.u32 2147483647, %v255
    %v288 = vand.u32 2147483647, %v256
    %v289 = vand.u32 2147483647, %v257
    %v290 = vand.u32 2147483647, %v258
    %v291 = vsub.f32 0.0, %v275
    %v292 = vsub.f32 0.0, %v276
    %v293 = vsub.f32 0.0, %v277
    %v294 = vsub.f32 0.0, %v278
    %v295 = vsub.f32 0.0, %v279
    %v296 = vsub.f32 0.0, %v280
    %v297 = vsub.f32 0.0, %v281
    %v298 = vsub.f32 0.0, %v282
    %v299 = vsub.f32 0.0, %v283
    %v300 = vsub.f32 0.0, %v284
    %v301 = vsub.f32 0.0, %v285
    %v302 = vsub.f32 0.0, %v286
    %v303 = vsub.f32 0.0, %v287
    %v304 = vsub.f32 0.0, %v288
    %v305 = vsub.f32 0.0, %v289
    %v306 = vsub.f32 0.0, %v290
    %v307 = vmul.f32 %v291, 1.442695
    %v308 = vpow.pop %v307
    %v309 = vmul.f32 %v292, 1.442695
    %v310 = vpow.pop %v309
    %v311 = vmul.f32 %v293, 1.442695
    %v312 = vpow.pop %v311
    %v313 = vmul.f32 %v294, 1.442695
    %v314 = vpow.pop %v313
    %v315 = vmul.f32 %v295, 1.442695
    %v316 = vpow.pop %v315
    %v317 = vmul.f32 %v296, 1.442695
    %v318 = vpow.pop %v317
    %v319 = vmul.f32 %v297, 1.442695
    %v320 = vpow.pop %v319
    %v321 = vmul.f32 %v298, 1.442695
    %v322 = vpow.pop %v321
    %v323 = vmul.f32 %v299, 1.442695
    %v324 = vpow.pop %v323
    %v325 = vmul.f32 %v300, 1.442695
    %v326 = vpow.pop %v325
    %v327 = vmul.f32 %v301, 1.442695
    %v328 = vpow.pop %v327
    %v329 = vmul.f32 %v302, 1.442695
    %v330 = vpow.pop %v329
    %v331 = vmul.f32 %v303, 1.442695
    %v332 = vpow.pop %v331
    %v333 = vmul.f32 %v304, 1.442695
    %v334 = vpow.pop %v333
    %v335 = vmul.f32 %v305, 1.442695
    %v336 = vpow.pop %v335
    %v337 = vmul.f32 %v306, 1.442695
    %v338 = vpow.pop %v337
    %v339 = vadd.f32 %v308, 1.0
    %v340 = vlog2.pop %v339
    %v341 = vmul.f32 %v340, 0.6931472
    %v342 = vmul.f32 -0.5, %v308
    %v343 = vadd.f32 %v342, 1.0
    %v344 = vmul.f32 %v343, %v308
    %v345 = vand.u32 2147483647, %v308
    %vm346 = vcmp.lt.f32.partialorder %v345, 0.0004427343
    %v347 = vsel %vm346, %v344, %v341
    %v348 = vadd.f32 %v310, 1.0
    %v349 = vlog2.pop %v348
    %v350 = vmul.f32 %v349, 0.6931472
    %v351 = vmul.f32 -0.5, %v310
    %v352 = vadd.f32 %v351, 1.0
    %v353 = vmul.f32 %v352, %v310
    %v354 = vand.u32 2147483647, %v310
    %vm355 = vcmp.lt.f32.partialorder %v354, 0.0004427343
    %v356 = vsel %vm355, %v353, %v350
    %v357 = vadd.f32 %v312, 1.0
    %v358 = vlog2.pop %v357
    %v359 = vmul.f32 %v358, 0.6931472
    %v360 = vmul.f32 -0.5, %v312
    %v361 = vadd.f32 %v360, 1.0
    %v362 = vmul.f32 %v361, %v312
    %v363 = vand.u32 2147483647, %v312
    %vm364 = vcmp.lt.f32.partialorder %v363, 0.0004427343
    %v365 = vsel %vm364, %v362, %v359
    %v366 = vadd.f32 %v314, 1.0
    %v367 = vlog2.pop %v366
    %v368 = vmul.f32 %v367, 0.6931472
    %v369 = vmul.f32 -0.5, %v314
    %v370 = vadd.f32 %v369, 1.0
    %v371 = vmul.f32 %v370, %v314
    %v372 = vand.u32 2147483647, %v314
    %vm373 = vcmp.lt.f32.partialorder %v372, 0.0004427343
    %v374 = vsel %vm373, %v371, %v368
    %v375 = vadd.f32 %v316, 1.0
    %v376 = vlog2.pop %v375
    %v377 = vmul.f32 %v376, 0.6931472
    %v378 = vmul.f32 -0.5, %v316
    %v379 = vadd.f32 %v378, 1.0
    %v380 = vmul.f32 %v379, %v316
    %v381 = vand.u32 2147483647, %v316
    %vm382 = vcmp.lt.f32.partialorder %v381, 0.0004427343
    %v383 = vsel %vm382, %v380, %v377
    %v384 = vadd.f32 %v318, 1.0
    %v385 = vlog2.pop %v384
    %v386 = vmul.f32 %v385, 0.6931472
    %v387 = vmul.f32 -0.5, %v318
    %v388 = vadd.f32 %v387, 1.0
    %v389 = vmul.f32 %v388, %v318
    %v390 = vand.u32 2147483647, %v318
    %vm391 = vcmp.lt.f32.partialorder %v390, 0.0004427343
    %v392 = vsel %vm391, %v389, %v386
    %v393 = vadd.f32 %v320, 1.0
    %v394 = vlog2.pop %v393
    %v395 = vmul.f32 %v394, 0.6931472
    %v396 = vmul.f32 -0.5, %v320
    %v397 = vadd.f32 %v396, 1.0
    %v398 = vmul.f32 %v397, %v320
    %v399 = vand.u32 2147483647, %v320
    %vm400 = vcmp.lt.f32.partialorder %v399, 0.0004427343
    %v401 = vsel %vm400, %v398, %v395
    %v402 = vadd.f32 %v322, 1.0
    %v403 = vlog2.pop %v402
    %v404 = vmul.f32 %v403, 0.6931472
    %v405 = vmul.f32 -0.5, %v322
    %v406 = vadd.f32 %v405, 1.0
    %v407 = vmul.f32 %v406, %v322
    %v408 = vand.u32 2147483647, %v322
    %vm409 = vcmp.lt.f32.partialorder %v408, 0.0004427343
    %v410 = vsel %vm409, %v407, %v404
    %v411 = vadd.f32 %v324, 1.0
    %v412 = vlog2.pop %v411
    %v413 = vmul.f32 %v412, 0.6931472
    %v414 = vmul.f32 -0.5, %v324
    %v415 = vadd.f32 %v414, 1.0
    %v416 = vmul.f32 %v415, %v324
    %v417 = vand.u32 2147483647, %v324
    %vm418 = vcmp.lt.f32.partialorder %v417, 0.0004427343
    %v419 = vsel %vm418, %v416, %v413
    %v420 = vadd.f32 %v326, 1.0
    %v421 = vlog2.pop %v420
    %v422 = vmul.f32 %v421, 0.6931472
    %v423 = vmul.f32 -0.5, %v326
    %v424 = vadd.f32 %v423, 1.0
    %v425 = vmul.f32 %v424, %v326
    %v426 = vand.u32 2147483647, %v326
    %vm427 = vcmp.lt.f32.partialorder %v426, 0.0004427343
    %v428 = vsel %vm427, %v425, %v422
    %v429 = vadd.f32 %v328, 1.0
    %v430 = vlog2.pop %v429
    %v431 = vmul.f32 %v430, 0.6931472
    %v432 = vmul.f32 -0.5, %v328
    %v433 = vadd.f32 %v432, 1.0
    %v434 = vmul.f32 %v433, %v328
    %v435 = vand.u32 2147483647, %v328
    %vm436 = vcmp.lt.f32.partialorder %v435, 0.0004427343
    %v437 = vsel %vm436, %v434, %v431
    %v438 = vadd.f32 %v330, 1.0
    %v439 = vlog2.pop %v438
    %v440 = vmul.f32 %v439, 0.6931472
    %v441 = vmul.f32 -0.5, %v330
    %v442 = vadd.f32 %v441, 1.0
    %v443 = vmul.f32 %v442, %v330
    %v444 = vand.u32 2147483647, %v330
    %vm445 = vcmp.lt.f32.partialorder %v444, 0.0004427343
    %v446 = vsel %vm445, %v443, %v440
    %v447 = vadd.f32 %v332, 1.0
    %v448 = vlog2.pop %v447
    %v449 = vmul.f32 %v448, 0.6931472
    %v450 = vmul.f32 -0.5, %v332
    %v451 = vadd.f32 %v450, 1.0
    %v452 = vmul.f32 %v451, %v332
    %v453 = vand.u32 2147483647, %v332
    %vm454 = vcmp.lt.f32.partialorder %v453, 0.0004427343
    %v455 = vsel %vm454, %v452, %v449
    %v456 = vadd.f32 %v334, 1.0
    %v457 = vlog2.pop %v456
    %v458 = vmul.f32 %v457, 0.6931472
    %v459 = vmul.f32 -0.5, %v334
    %v460 = vadd.f32 %v459, 1.0
    %v461 = vmul.f32 %v460, %v334
    %v462 = vand.u32 2147483647, %v334
    %vm463 = vcmp.lt.f32.partialorder %v462, 0.0004427343
    %v464 = vsel %vm463, %v461, %v458
    %v465 = vadd.f32 %v336, 1.0
    %v466 = vlog2.pop %v465
    %v467 = vmul.f32 %v466, 0.6931472
    %v468 = vmul.f32 -0.5, %v336
    %v469 = vadd.f32 %v468, 1.0
    %v470 = vmul.f32 %v469, %v336
    %v471 = vand.u32 2147483647, %v336
    %vm472 = vcmp.lt.f32.partialorder %v471, 0.0004427343
    %v473 = vsel %vm472, %v470, %v467
    %v474 = vadd.f32 %v338, 1.0
    %v475 = vlog2.pop %v474
    %v476 = vmul.f32 %v475, 0.6931472
    %v477 = vmul.f32 -0.5, %v338
    %v478 = vadd.f32 %v477, 1.0
    %v479 = vmul.f32 %v478, %v338
    %v480 = vand.u32 2147483647, %v338
    %vm481 = vcmp.lt.f32.partialorder %v480, 0.0004427343
    %v482 = vsel %vm481, %v479, %v476
    %v483 = vadd.f32 %v259, %v347
    %v484 = vadd.f32 %v260, %v356
    %v485 = vadd.f32 %v261, %v365
    %v486 = vadd.f32 %v262, %v374
    %v487 = vadd.f32 %v263, %v383
    %v488 = vadd.f32 %v264, %v392
    %v489 = vadd.f32 %v265, %v401
    %v490 = vadd.f32 %v266, %v410
    %v491 = vadd.f32 %v267, %v419
    %v492 = vadd.f32 %v268, %v428
    %v493 = vadd.f32 %v269, %v437
    %v494 = vadd.f32 %v270, %v446
    %v495 = vadd.f32 %v271, %v455
    %v496 = vadd.f32 %v272, %v464
    %v497 = vadd.f32 %v273, %v473
    %v498 = vadd.f32 %v274, %v482
    %v499 = vld [vmem:[#allocation8] sm:$0xff]
    %v500 = vld [vmem:[#allocation8 + $0x8] sm:$0xff]
    %v501 = vld [vmem:[#allocation8 + $0x10] sm:$0xff]
    %v502 = vld [vmem:[#allocation8 + $0x18] sm:$0xff]
    %v503 = vld [vmem:[#allocation8 + $0x20] sm:$0xff]
    %v504 = vld [vmem:[#allocation8 + $0x28] sm:$0xff]
    %v505 = vld [vmem:[#allocation8 + $0x30] sm:$0xff]
    %v506 = vld [vmem:[#allocation8 + $0x38] sm:$0xff]
    %v507 = vld [vmem:[#allocation8 + $0x40] sm:$0xff]
    %v508 = vld [vmem:[#allocation8 + $0x48] sm:$0xff]
    %v509 = vld [vmem:[#allocation8 + $0x50] sm:$0xff]
    %v510 = vld [vmem:[#allocation8 + $0x58] sm:$0xff]
    %v511 = vld [vmem:[#allocation8 + $0x60] sm:$0xff]
    %v512 = vld [vmem:[#allocation8 + $0x68] sm:$0xff]
    %v513 = vld [vmem:[#allocation8 + $0x70] sm:$0xff]
    %v514 = vld [vmem:[#allocation8 + $0x78] sm:$0xff]
    %v515 = vmul.f32 %v483, %v499
    %v516 = vmul.f32 %v484, %v500
    %v517 = vmul.f32 %v485, %v501
    %v518 = vmul.f32 %v486, %v502
    %v519 = vmul.f32 %v487, %v503
    %v520 = vmul.f32 %v488, %v504
    %v521 = vmul.f32 %v489, %v505
    %v522 = vmul.f32 %v490, %v506
    %v523 = vmul.f32 %v491, %v507
    %v524 = vmul.f32 %v492, %v508
    %v525 = vmul.f32 %v493, %v509
    %v526 = vmul.f32 %v494, %v510
    %v527 = vmul.f32 %v495, %v511
    %v528 = vmul.f32 %v496, %v512
    %v529 = vmul.f32 %v497, %v513
    %v530 = vmul.f32 %v498, %v514
    %v531 = vadd.f32 %v227, %v515
    %v532 = vadd.f32 %v228, %v516
    %v533 = vadd.f32 %v229, %v517
    %v534 = vadd.f32 %v230, %v518
    %v535 = vadd.f32 %v231, %v519
    %v536 = vadd.f32 %v232, %v520
    %v537 = vadd.f32 %v233, %v521
    %v538 = vadd.f32 %v234, %v522
    %v539 = vadd.f32 %v235, %v523
    %v540 = vadd.f32 %v236, %v524
    %v541 = vadd.f32 %v237, %v525
    %v542 = vadd.f32 %v238, %v526
    %v543 = vadd.f32 %v239, %v527
    %v544 = vadd.f32 %v240, %v528
    %v545 = vadd.f32 %v241, %v529
    %v546 = vadd.f32 %v242, %v530
    %v547 = vpack.c.bf16 %v532, %v531
    %v548 = vpack.c.bf16 %v534, %v533
    %v549 = vpack.c.bf16 %v536, %v535
    %v550 = vpack.c.bf16 %v538, %v537
    %v551 = vpack.c.bf16 %v540, %v539
    %v552 = vpack.c.bf16 %v542, %v541
    %v553 = vpack.c.bf16 %v544, %v543
    %v554 = vpack.c.bf16 %v546, %v545
    %v555 = vld [vmem:[%s4] sm:$0x1]
    %v556 = vld [vmem:[%s5] sm:$0x1]
    %v557 = vmax.f32 %v556, 0.0
    %v558 = vand.u32 2147483647, %v556
    %v559 = vsub.f32 0.0, %v558
    %v560 = vmul.f32 %v559, 1.442695
    %v561 = vpow.pop %v560
    %v562 = vadd.f32 %v561, 1.0
    %v563 = vlog2.pop %v562
    %v564 = vmul.f32 %v563, 0.6931472
    %v565 = vmul.f32 -0.5, %v561
    %v566 = vadd.f32 %v565, 1.0
    %v567 = vmul.f32 %v566, %v561
    %v568 = vand.u32 2147483647, %v561
    %vm569 = vcmp.lt.f32.partialorder %v568, 0.0004427343
    %v570 = vsel %vm569, %v567, %v564
    %v571 = vadd.f32 %v557, %v570
    %v572 = vld [vmem:[%s6] sm:$0x1]
    %v573 = vmul.f32 %v571, %v572
    %v574 = vadd.f32 %v555, %v573
    %v576 = vperm.slane %v574, 0
    %v586 = vunpack.c.l.b16 %v219
    %v587 = vunpack.c.l.b16 %v220
    %v588 = vunpack.c.l.b16 %v221
    %v589 = vunpack.c.l.b16 %v222
    %v590 = vunpack.c.l.b16 %v223
    %v591 = vunpack.c.l.b16 %v224
    %v592 = vunpack.c.l.b16 %v225
    %v593 = vunpack.c.l.b16 %v226
    %v594 = vpack.c.b16 %v587, %v586
    %v595 = vpack.c.b16 %v589, %v588
    %v596 = vpack.c.b16 %v591, %v590
    %v597 = vpack.c.b16 %v593, %v592
    %602 = vmatpush.bf16.msra.mxu0 %v554
    %603 = vmatpush.bf16.msra.mxu0 %v553
    %604 = vmatpush.bf16.msra.mxu0 %v552
    %605 = vmatpush.bf16.msra.mxu0 %v551
    %606 = vmatpush.bf16.msra.mxu0 %v550
    %607 = vmatpush.bf16.msra.mxu0 %v549
    %608 = vmatpush.bf16.msra.mxu0 %v548
    %609 = vmatpush.bf16.msra.mxu0 %v547
    %610 = vmatmul.bf16.gmra.mxu0 %v594
    %v611 = vpop.f32.mrf.mxu0
    %v612 = vadd.f32 %v576, %v611
    %v613 = vpop.f32.mrf.mxu0
    %v614 = vadd.f32 %v576, %v613
    %615 = vmatmul.bf16.gmra.mxu0 %v595
    %v616 = vpop.f32.mrf.mxu0
    %v617 = vadd.f32 %v576, %v616
    %v618 = vpop.f32.mrf.mxu0
    %v619 = vadd.f32 %v576, %v618
    %620 = vmatmul.bf16.gmra.mxu0 %v596
    %v621 = vpop.f32.mrf.mxu0
    %v622 = vadd.f32 %v576, %v621
    %v623 = vpop.f32.mrf.mxu0
    %v624 = vadd.f32 %v576, %v623
    %625 = vmatmul.bf16.gmra.mxu0 %v597
    %v626 = vpop.f32.mrf.mxu0
    %v627 = vadd.f32 %v576, %v626
    %v628 = vpop.f32.mrf.mxu0
    %v629 = vadd.f32 %v576, %v628
    %630 = vdwg.mxu0
    %v631 = vxor.u32 %v612, 2147483648
    %v632 = vxor.u32 %v614, 2147483648
    %v633 = vxor.u32 %v617, 2147483648
    %v634 = vxor.u32 %v619, 2147483648
    %v635 = vxor.u32 %v622, 2147483648
    %v636 = vxor.u32 %v624, 2147483648
    %v637 = vxor.u32 %v627, 2147483648
    %v638 = vxor.u32 %v629, 2147483648
    %v639 = vmul.f32 %v631, 1.442695
    %v640 = vpow.pop %v639
    %v641 = vmul.f32 %v632, 1.442695
    %v642 = vpow.pop %v641
    %v643 = vmul.f32 %v633, 1.442695
    %v644 = vpow.pop %v643
    %v645 = vmul.f32 %v634, 1.442695
    %v646 = vpow.pop %v645
    %v647 = vmul.f32 %v635, 1.442695
    %v648 = vpow.pop %v647
    %v649 = vmul.f32 %v636, 1.442695
    %v650 = vpow.pop %v649
    %v651 = vmul.f32 %v637, 1.442695
    %v652 = vpow.pop %v651
    %v653 = vmul.f32 %v638, 1.442695
    %v654 = vpow.pop %v653
    %v655 = vadd.f32 %v640, 1.0
    %v656 = vadd.f32 %v642, 1.0
    %v657 = vadd.f32 %v644, 1.0
    %v658 = vadd.f32 %v646, 1.0
    %v659 = vadd.f32 %v648, 1.0
    %v660 = vadd.f32 %v650, 1.0
    %v661 = vadd.f32 %v652, 1.0
    %v662 = vadd.f32 %v654, 1.0
    %v663 = vrcp.pop %v655
    %v664 = vmul.f32 %v655, %v663
    %v665 = vsub.f32 1.0, %v664
    %v666 = vmul.f32 %v663, %v665
    %v667 = vadd.f32 %v663, %v666
    %vm668 = vweird.f32 %v655
    %vm669 = vweird.f32 %v663
    %vm670 = vmor %vm668, %vm669
    %v671 = vsel %vm670, %v663, %v667
    %v672 = vand.u32 2147483647, %v655
    %vm673 = vcmp.eq.f32.partialorder %v672, 8.507059e+37
    %v674 = vand.u32 %v655, 2147483648
    %v675 = vor.u32 1.1754944e-38, %v674
    %v676 = vsel %vm673, %v675, %v671
    %v677 = vmul.f32 1.0, %v676
    %v678 = vrcp.pop %v656
    %v679 = vmul.f32 %v656, %v678
    %v680 = vsub.f32 1.0, %v679
    %v681 = vmul.f32 %v678, %v680
    %v682 = vadd.f32 %v678, %v681
    %vm683 = vweird.f32 %v656
    %vm684 = vweird.f32 %v678
    %vm685 = vmor %vm683, %vm684
    %v686 = vsel %vm685, %v678, %v682
    %v687 = vand.u32 2147483647, %v656
    %vm688 = vcmp.eq.f32.partialorder %v687, 8.507059e+37
    %v689 = vand.u32 %v656, 2147483648
    %v690 = vor.u32 1.1754944e-38, %v689
    %v691 = vsel %vm688, %v690, %v686
    %v692 = vmul.f32 1.0, %v691
    %v693 = vrcp.pop %v657
    %v694 = vmul.f32 %v657, %v693
    %v695 = vsub.f32 1.0, %v694
    %v696 = vmul.f32 %v693, %v695
    %v697 = vadd.f32 %v693, %v696
    %vm698 = vweird.f32 %v657
    %vm699 = vweird.f32 %v693
    %vm700 = vmor %vm698, %vm699
    %v701 = vsel %vm700, %v693, %v697
    %v702 = vand.u32 2147483647, %v657
    %vm703 = vcmp.eq.f32.partialorder %v702, 8.507059e+37
    %v704 = vand.u32 %v657, 2147483648
    %v705 = vor.u32 1.1754944e-38, %v704
    %v706 = vsel %vm703, %v705, %v701
    %v707 = vmul.f32 1.0, %v706
    %v708 = vrcp.pop %v658
    %v709 = vmul.f32 %v658, %v708
    %v710 = vsub.f32 1.0, %v709
    %v711 = vmul.f32 %v708, %v710
    %v712 = vadd.f32 %v708, %v711
    %vm713 = vweird.f32 %v658
    %vm714 = vweird.f32 %v708
    %vm715 = vmor %vm713, %vm714
    %v716 = vsel %vm715, %v708, %v712
    %v717 = vand.u32 2147483647, %v658
    %vm718 = vcmp.eq.f32.partialorder %v717, 8.507059e+37
    %v719 = vand.u32 %v658, 2147483648
    %v720 = vor.u32 1.1754944e-38, %v719
    %v721 = vsel %vm718, %v720, %v716
    %v722 = vmul.f32 1.0, %v721
    %v723 = vrcp.pop %v659
    %v724 = vmul.f32 %v659, %v723
    %v725 = vsub.f32 1.0, %v724
    %v726 = vmul.f32 %v723, %v725
    %v727 = vadd.f32 %v723, %v726
    %vm728 = vweird.f32 %v659
    %vm729 = vweird.f32 %v723
    %vm730 = vmor %vm728, %vm729
    %v731 = vsel %vm730, %v723, %v727
    %v732 = vand.u32 2147483647, %v659
    %vm733 = vcmp.eq.f32.partialorder %v732, 8.507059e+37
    %v734 = vand.u32 %v659, 2147483648
    %v735 = vor.u32 1.1754944e-38, %v734
    %v736 = vsel %vm733, %v735, %v731
    %v737 = vmul.f32 1.0, %v736
    %v738 = vrcp.pop %v660
    %v739 = vmul.f32 %v660, %v738
    %v740 = vsub.f32 1.0, %v739
    %v741 = vmul.f32 %v738, %v740
    %v742 = vadd.f32 %v738, %v741
    %vm743 = vweird.f32 %v660
    %vm744 = vweird.f32 %v738
    %vm745 = vmor %vm743, %vm744
    %v746 = vsel %vm745, %v738, %v742
    %v747 = vand.u32 2147483647, %v660
    %vm748 = vcmp.eq.f32.partialorder %v747, 8.507059e+37
    %v749 = vand.u32 %v660, 2147483648
    %v750 = vor.u32 1.1754944e-38, %v749
    %v751 = vsel %vm748, %v750, %v746
    %v752 = vmul.f32 1.0, %v751
    %v753 = vrcp.pop %v661
    %v754 = vmul.f32 %v661, %v753
    %v755 = vsub.f32 1.0, %v754
    %v756 = vmul.f32 %v753, %v755
    %v757 = vadd.f32 %v753, %v756
    %vm758 = vweird.f32 %v661
    %vm759 = vweird.f32 %v753
    %vm760 = vmor %vm758, %vm759
    %v761 = vsel %vm760, %v753, %v757
    %v762 = vand.u32 2147483647, %v661
    %vm763 = vcmp.eq.f32.partialorder %v762, 8.507059e+37
    %v764 = vand.u32 %v661, 2147483648
    %v765 = vor.u32 1.1754944e-38, %v764
    %v766 = vsel %vm763, %v765, %v761
    %v767 = vmul.f32 1.0, %v766
    %v768 = vrcp.pop %v662
    %v769 = vmul.f32 %v662, %v768
    %v770 = vsub.f32 1.0, %v769
    %v771 = vmul.f32 %v768, %v770
    %v772 = vadd.f32 %v768, %v771
    %vm773 = vweird.f32 %v662
    %vm774 = vweird.f32 %v768
    %vm775 = vmor %vm773, %vm774
    %v776 = vsel %vm775, %v768, %v772
    %v777 = vand.u32 2147483647, %v662
    %vm778 = vcmp.eq.f32.partialorder %v777, 8.507059e+37
    %v779 = vand.u32 %v662, 2147483648
    %v780 = vor.u32 1.1754944e-38, %v779
    %v781 = vsel %vm778, %v780, %v776
    %v782 = vmul.f32 1.0, %v781
    %v783 = vpack.c.bf16 %v692, %v677
    %v784 = vpack.c.bf16 %v722, %v707
    %v785 = vpack.c.bf16 %v752, %v737
    %v786 = vpack.c.bf16 %v782, %v767
    %v787 = vld [vmem:[#allocation10] sm:$0xff]
    %v788 = vld [vmem:[#allocation10 + $0x8] sm:$0xff]
    %v789 = vld [vmem:[#allocation10 + $0x10] sm:$0xff]
    %v790 = vld [vmem:[#allocation10 + $0x18] sm:$0xff]
    %v791 = vld [vmem:[#allocation10 + $0x20] sm:$0xff]
    %v792 = vld [vmem:[#allocation10 + $0x28] sm:$0xff]
    %v793 = vld [vmem:[#allocation10 + $0x30] sm:$0xff]
    %v794 = vld [vmem:[#allocation10 + $0x38] sm:$0xff]
    %v795 = vld [vmem:[#allocation10 + $0x40] sm:$0xff]
    %v796 = vld [vmem:[#allocation10 + $0x48] sm:$0xff]
    %v797 = vld [vmem:[#allocation10 + $0x50] sm:$0xff]
    %v798 = vld [vmem:[#allocation10 + $0x58] sm:$0xff]
    %v799 = vld [vmem:[#allocation10 + $0x60] sm:$0xff]
    %v800 = vld [vmem:[#allocation10 + $0x68] sm:$0xff]
    %v801 = vld [vmem:[#allocation10 + $0x70] sm:$0xff]
    %v802 = vld [vmem:[#allocation10 + $0x78] sm:$0xff]
    %v803 = vld [vmem:[#allocation11] sm:$0xff]
    %v804 = vld [vmem:[#allocation11 + $0x8] sm:$0xff]
    %v805 = vld [vmem:[#allocation11 + $0x10] sm:$0xff]
    %v806 = vld [vmem:[#allocation11 + $0x18] sm:$0xff]
    %v807 = vld [vmem:[#allocation11 + $0x20] sm:$0xff]
    %v808 = vld [vmem:[#allocation11 + $0x28] sm:$0xff]
    %v809 = vld [vmem:[#allocation11 + $0x30] sm:$0xff]
    %v810 = vld [vmem:[#allocation11 + $0x38] sm:$0xff]
    %v811 = vld [vmem:[#allocation11 + $0x40] sm:$0xff]
    %v812 = vld [vmem:[#allocation11 + $0x48] sm:$0xff]
    %v813 = vld [vmem:[#allocation11 + $0x50] sm:$0xff]
    %v814 = vld [vmem:[#allocation11 + $0x58] sm:$0xff]
    %v815 = vld [vmem:[#allocation11 + $0x60] sm:$0xff]
    %v816 = vld [vmem:[#allocation11 + $0x68] sm:$0xff]
    %v817 = vld [vmem:[#allocation11 + $0x70] sm:$0xff]
    %v818 = vld [vmem:[#allocation11 + $0x78] sm:$0xff]
    %v819 = vmax.f32 %v803, 0.0
    %v820 = vmax.f32 %v804, 0.0
    %v821 = vmax.f32 %v805, 0.0
    %v822 = vmax.f32 %v806, 0.0
    %v823 = vmax.f32 %v807, 0.0
    %v824 = vmax.f32 %v808, 0.0
    %v825 = vmax.f32 %v809, 0.0
    %v826 = vmax.f32 %v810, 0.0
    %v827 = vmax.f32 %v811, 0.0
    %v828 = vmax.f32 %v812, 0.0
    %v829 = vmax.f32 %v813, 0.0
    %v830 = vmax.f32 %v814, 0.0
    %v831 = vmax.f32 %v815, 0.0
    %v832 = vmax.f32 %v816, 0.0
    %v833 = vmax.f32 %v817, 0.0
    %v834 = vmax.f32 %v818, 0.0
    %v835 = vand.u32 2147483647, %v803
    %v836 = vand.u32 2147483647, %v804
    %v837 = vand.u32 2147483647, %v805
    %v838 = vand.u32 2147483647, %v806
    %v839 = vand.u32 2147483647, %v807
    %v840 = vand.u32 2147483647, %v808
    %v841 = vand.u32 2147483647, %v809
    %v842 = vand.u32 2147483647, %v810
    %v843 = vand.u32 2147483647, %v811
    %v844 = vand.u32 2147483647, %v812
    %v845 = vand.u32 2147483647, %v813
    %v846 = vand.u32 2147483647, %v814
    %v847 = vand.u32 2147483647, %v815
    %v848 = vand.u32 2147483647, %v816
    %v849 = vand.u32 2147483647, %v817
    %v850 = vand.u32 2147483647, %v818
    %v851 = vsub.f32 0.0, %v835
    %v852 = vsub.f32 0.0, %v836
    %v853 = vsub.f32 0.0, %v837
    %v854 = vsub.f32 0.0, %v838
    %v855 = vsub.f32 0.0, %v839
    %v856 = vsub.f32 0.0, %v840
    %v857 = vsub.f32 0.0, %v841
    %v858 = vsub.f32 0.0, %v842
    %v859 = vsub.f32 0.0, %v843
    %v860 = vsub.f32 0.0, %v844
    %v861 = vsub.f32 0.0, %v845
    %v862 = vsub.f32 0.0, %v846
    %v863 = vsub.f32 0.0, %v847
    %v864 = vsub.f32 0.0, %v848
    %v865 = vsub.f32 0.0, %v849
    %v866 = vsub.f32 0.0, %v850
    %v867 = vmul.f32 %v851, 1.442695
    %v868 = vpow.pop %v867
    %v869 = vmul.f32 %v852, 1.442695
    %v870 = vpow.pop %v869
    %v871 = vmul.f32 %v853, 1.442695
    %v872 = vpow.pop %v871
    %v873 = vmul.f32 %v854, 1.442695
    %v874 = vpow.pop %v873
    %v875 = vmul.f32 %v855, 1.442695
    %v876 = vpow.pop %v875
    %v877 = vmul.f32 %v856, 1.442695
    %v878 = vpow.pop %v877
    %v879 = vmul.f32 %v857, 1.442695
    %v880 = vpow.pop %v879
    %v881 = vmul.f32 %v858, 1.442695
    %v882 = vpow.pop %v881
    %v883 = vmul.f32 %v859, 1.442695
    %v884 = vpow.pop %v883
    %v885 = vmul.f32 %v860, 1.442695
    %v886 = vpow.pop %v885
    %v887 = vmul.f32 %v861, 1.442695
    %v888 = vpow.pop %v887
    %v889 = vmul.f32 %v862, 1.442695
    %v890 = vpow.pop %v889
    %v891 = vmul.f32 %v863, 1.442695
    %v892 = vpow.pop %v891
    %v893 = vmul.f32 %v864, 1.442695
    %v894 = vpow.pop %v893
    %v895 = vmul.f32 %v865, 1.442695
    %v896 = vpow.pop %v895
    %v897 = vmul.f32 %v866, 1.442695
    %v898 = vpow.pop %v897
    %v899 = vadd.f32 %v868, 1.0
    %v900 = vlog2.pop %v899
    %v901 = vmul.f32 %v900, 0.6931472
    %v902 = vmul.f32 -0.5, %v868
    %v903 = vadd.f32 %v902, 1.0
    %v904 = vmul.f32 %v903, %v868
    %v905 = vand.u32 2147483647, %v868
    %vm906 = vcmp.lt.f32.partialorder %v905, 0.0004427343
    %v907 = vsel %vm906, %v904, %v901
    %v908 = vadd.f32 %v870, 1.0
    %v909 = vlog2.pop %v908
    %v910 = vmul.f32 %v909, 0.6931472
    %v911 = vmul.f32 -0.5, %v870
    %v912 = vadd.f32 %v911, 1.0
    %v913 = vmul.f32 %v912, %v870
    %v914 = vand.u32 2147483647, %v870
    %vm915 = vcmp.lt.f32.partialorder %v914, 0.0004427343
    %v916 = vsel %vm915, %v913, %v910
    %v917 = vadd.f32 %v872, 1.0
    %v918 = vlog2.pop %v917
    %v919 = vmul.f32 %v918, 0.6931472
    %v920 = vmul.f32 -0.5, %v872
    %v921 = vadd.f32 %v920, 1.0
    %v922 = vmul.f32 %v921, %v872
    %v923 = vand.u32 2147483647, %v872
    %vm924 = vcmp.lt.f32.partialorder %v923, 0.0004427343
    %v925 = vsel %vm924, %v922, %v919
    %v926 = vadd.f32 %v874, 1.0
    %v927 = vlog2.pop %v926
    %v928 = vmul.f32 %v927, 0.6931472
    %v929 = vmul.f32 -0.5, %v874
    %v930 = vadd.f32 %v929, 1.0
    %v931 = vmul.f32 %v930, %v874
    %v932 = vand.u32 2147483647, %v874
    %vm933 = vcmp.lt.f32.partialorder %v932, 0.0004427343
    %v934 = vsel %vm933, %v931, %v928
    %v935 = vadd.f32 %v876, 1.0
    %v936 = vlog2.pop %v935
    %v937 = vmul.f32 %v936, 0.6931472
    %v938 = vmul.f32 -0.5, %v876
    %v939 = vadd.f32 %v938, 1.0
    %v940 = vmul.f32 %v939, %v876
    %v941 = vand.u32 2147483647, %v876
    %vm942 = vcmp.lt.f32.partialorder %v941, 0.0004427343
    %v943 = vsel %vm942, %v940, %v937
    %v944 = vadd.f32 %v878, 1.0
    %v945 = vlog2.pop %v944
    %v946 = vmul.f32 %v945, 0.6931472
    %v947 = vmul.f32 -0.5, %v878
    %v948 = vadd.f32 %v947, 1.0
    %v949 = vmul.f32 %v948, %v878
    %v950 = vand.u32 2147483647, %v878
    %vm951 = vcmp.lt.f32.partialorder %v950, 0.0004427343
    %v952 = vsel %vm951, %v949, %v946
    %v953 = vadd.f32 %v880, 1.0
    %v954 = vlog2.pop %v953
    %v955 = vmul.f32 %v954, 0.6931472
    %v956 = vmul.f32 -0.5, %v880
    %v957 = vadd.f32 %v956, 1.0
    %v958 = vmul.f32 %v957, %v880
    %v959 = vand.u32 2147483647, %v880
    %vm960 = vcmp.lt.f32.partialorder %v959, 0.0004427343
    %v961 = vsel %vm960, %v958, %v955
    %v962 = vadd.f32 %v882, 1.0
    %v963 = vlog2.pop %v962
    %v964 = vmul.f32 %v963, 0.6931472
    %v965 = vmul.f32 -0.5, %v882
    %v966 = vadd.f32 %v965, 1.0
    %v967 = vmul.f32 %v966, %v882
    %v968 = vand.u32 2147483647, %v882
    %vm969 = vcmp.lt.f32.partialorder %v968, 0.0004427343
    %v970 = vsel %vm969, %v967, %v964
    %v971 = vadd.f32 %v884, 1.0
    %v972 = vlog2.pop %v971
    %v973 = vmul.f32 %v972, 0.6931472
    %v974 = vmul.f32 -0.5, %v884
    %v975 = vadd.f32 %v974, 1.0
    %v976 = vmul.f32 %v975, %v884
    %v977 = vand.u32 2147483647, %v884
    %vm978 = vcmp.lt.f32.partialorder %v977, 0.0004427343
    %v979 = vsel %vm978, %v976, %v973
    %v980 = vadd.f32 %v886, 1.0
    %v981 = vlog2.pop %v980
    %v982 = vmul.f32 %v981, 0.6931472
    %v983 = vmul.f32 -0.5, %v886
    %v984 = vadd.f32 %v983, 1.0
    %v985 = vmul.f32 %v984, %v886
    %v986 = vand.u32 2147483647, %v886
    %vm987 = vcmp.lt.f32.partialorder %v986, 0.0004427343
    %v988 = vsel %vm987, %v985, %v982
    %v989 = vadd.f32 %v888, 1.0
    %v990 = vlog2.pop %v989
    %v991 = vmul.f32 %v990, 0.6931472
    %v992 = vmul.f32 -0.5, %v888
    %v993 = vadd.f32 %v992, 1.0
    %v994 = vmul.f32 %v993, %v888
    %v995 = vand.u32 2147483647, %v888
    %vm996 = vcmp.lt.f32.partialorder %v995, 0.0004427343
    %v997 = vsel %vm996, %v994, %v991
    %v998 = vadd.f32 %v890, 1.0
    %v999 = vlog2.pop %v998
    %v1000 = vmul.f32 %v999, 0.6931472
    %v1001 = vmul.f32 -0.5, %v890
    %v1002 = vadd.f32 %v1001, 1.0
    %v1003 = vmul.f32 %v1002, %v890
    %v1004 = vand.u32 2147483647, %v890
    %vm1005 = vcmp.lt.f32.partialorder %v1004, 0.0004427343
    %v1006 = vsel %vm1005, %v1003, %v1000
    %v1007 = vadd.f32 %v892, 1.0
    %v1008 = vlog2.pop %v1007
    %v1009 = vmul.f32 %v1008, 0.6931472
    %v1010 = vmul.f32 -0.5, %v892
    %v1011 = vadd.f32 %v1010, 1.0
    %v1012 = vmul.f32 %v1011, %v892
    %v1013 = vand.u32 2147483647, %v892
    %vm1014 = vcmp.lt.f32.partialorder %v1013, 0.0004427343
    %v1015 = vsel %vm1014, %v1012, %v1009
    %v1016 = vadd.f32 %v894, 1.0
    %v1017 = vlog2.pop %v1016
    %v1018 = vmul.f32 %v1017, 0.6931472
    %v1019 = vmul.f32 -0.5, %v894
    %v1020 = vadd.f32 %v1019, 1.0
    %v1021 = vmul.f32 %v1020, %v894
    %v1022 = vand.u32 2147483647, %v894
    %vm1023 = vcmp.lt.f32.partialorder %v1022, 0.0004427343
    %v1024 = vsel %vm1023, %v1021, %v1018
    %v1025 = vadd.f32 %v896, 1.0
    %v1026 = vlog2.pop %v1025
    %v1027 = vmul.f32 %v1026, 0.6931472
    %v1028 = vmul.f32 -0.5, %v896
    %v1029 = vadd.f32 %v1028, 1.0
    %v1030 = vmul.f32 %v1029, %v896
    %v1031 = vand.u32 2147483647, %v896
    %vm1032 = vcmp.lt.f32.partialorder %v1031, 0.0004427343
    %v1033 = vsel %vm1032, %v1030, %v1027
    %v1034 = vadd.f32 %v898, 1.0
    %v1035 = vlog2.pop %v1034
    %v1036 = vmul.f32 %v1035, 0.6931472
    %v1037 = vmul.f32 -0.5, %v898
    %v1038 = vadd.f32 %v1037, 1.0
    %v1039 = vmul.f32 %v1038, %v898
    %v1040 = vand.u32 2147483647, %v898
    %vm1041 = vcmp.lt.f32.partialorder %v1040, 0.0004427343
    %v1042 = vsel %vm1041, %v1039, %v1036
    %v1043 = vadd.f32 %v819, %v907
    %v1044 = vadd.f32 %v820, %v916
    %v1045 = vadd.f32 %v821, %v925
    %v1046 = vadd.f32 %v822, %v934
    %v1047 = vadd.f32 %v823, %v943
    %v1048 = vadd.f32 %v824, %v952
    %v1049 = vadd.f32 %v825, %v961
    %v1050 = vadd.f32 %v826, %v970
    %v1051 = vadd.f32 %v827, %v979
    %v1052 = vadd.f32 %v828, %v988
    %v1053 = vadd.f32 %v829, %v997
    %v1054 = vadd.f32 %v830, %v1006
    %v1055 = vadd.f32 %v831, %v1015
    %v1056 = vadd.f32 %v832, %v1024
    %v1057 = vadd.f32 %v833, %v1033
    %v1058 = vadd.f32 %v834, %v1042
    %v1059 = vld [vmem:[#allocation13] sm:$0xff]
    %v1060 = vld [vmem:[#allocation13 + $0x8] sm:$0xff]
    %v1061 = vld [vmem:[#allocation13 + $0x10] sm:$0xff]
    %v1062 = vld [vmem:[#allocation13 + $0x18] sm:$0xff]
    %v1063 = vld [vmem:[#allocation13 + $0x20] sm:$0xff]
    %v1064 = vld [vmem:[#allocation13 + $0x28] sm:$0xff]
    %v1065 = vld [vmem:[#allocation13 + $0x30] sm:$0xff]
    %v1066 = vld [vmem:[#allocation13 + $0x38] sm:$0xff]
    %v1067 = vld [vmem:[#allocation13 + $0x40] sm:$0xff]
    %v1068 = vld [vmem:[#allocation13 + $0x48] sm:$0xff]
    %v1069 = vld [vmem:[#allocation13 + $0x50] sm:$0xff]
    %v1070 = vld [vmem:[#allocation13 + $0x58] sm:$0xff]
    %v1071 = vld [vmem:[#allocation13 + $0x60] sm:$0xff]
    %v1072 = vld [vmem:[#allocation13 + $0x68] sm:$0xff]
    %v1073 = vld [vmem:[#allocation13 + $0x70] sm:$0xff]
    %v1074 = vld [vmem:[#allocation13 + $0x78] sm:$0xff]
    %v1075 = vmul.f32 %v1043, %v1059
    %v1076 = vmul.f32 %v1044, %v1060
    %v1077 = vmul.f32 %v1045, %v1061
    %v1078 = vmul.f32 %v1046, %v1062
    %v1079 = vmul.f32 %v1047, %v1063
    %v1080 = vmul.f32 %v1048, %v1064
    %v1081 = vmul.f32 %v1049, %v1065
    %v1082 = vmul.f32 %v1050, %v1066
    %v1083 = vmul.f32 %v1051, %v1067
    %v1084 = vmul.f32 %v1052, %v1068
    %v1085 = vmul.f32 %v1053, %v1069
    %v1086 = vmul.f32 %v1054, %v1070
    %v1087 = vmul.f32 %v1055, %v1071
    %v1088 = vmul.f32 %v1056, %v1072
    %v1089 = vmul.f32 %v1057, %v1073
    %v1090 = vmul.f32 %v1058, %v1074
    %v1091 = vadd.f32 %v787, %v1075
    %v1092 = vadd.f32 %v788, %v1076
    %v1093 = vadd.f32 %v789, %v1077
    %v1094 = vadd.f32 %v790, %v1078
    %v1095 = vadd.f32 %v791, %v1079
    %v1096 = vadd.f32 %v792, %v1080
    %v1097 = vadd.f32 %v793, %v1081
    %v1098 = vadd.f32 %v794, %v1082
    %v1099 = vadd.f32 %v795, %v1083
    %v1100 = vadd.f32 %v796, %v1084
    %v1101 = vadd.f32 %v797, %v1085
    %v1102 = vadd.f32 %v798, %v1086
    %v1103 = vadd.f32 %v799, %v1087
    %v1104 = vadd.f32 %v800, %v1088
    %v1105 = vadd.f32 %v801, %v1089
    %v1106 = vadd.f32 %v802, %v1090
    %v1107 = vpack.c.bf16 %v1092, %v1091
    %v1108 = vpack.c.bf16 %v1094, %v1093
    %v1109 = vpack.c.bf16 %v1096, %v1095
    %v1110 = vpack.c.bf16 %v1098, %v1097
    %v1111 = vpack.c.bf16 %v1100, %v1099
    %v1112 = vpack.c.bf16 %v1102, %v1101
    %v1113 = vpack.c.bf16 %v1104, %v1103
    %v1114 = vpack.c.bf16 %v1106, %v1105
    %v1115 = vld [vmem:[%s10] sm:$0x1]
    %v1116 = vld [vmem:[%s11] sm:$0x1]
    %v1117 = vmax.f32 %v1116, 0.0
    %v1118 = vand.u32 2147483647, %v1116
    %v1119 = vsub.f32 0.0, %v1118
    %v1120 = vmul.f32 %v1119, 1.442695
    %v1121 = vpow.pop %v1120
    %v1122 = vadd.f32 %v1121, 1.0
    %v1123 = vlog2.pop %v1122
    %v1124 = vmul.f32 %v1123, 0.6931472
    %v1125 = vmul.f32 -0.5, %v1121
    %v1126 = vadd.f32 %v1125, 1.0
    %v1127 = vmul.f32 %v1126, %v1121
    %v1128 = vand.u32 2147483647, %v1121
    %vm1129 = vcmp.lt.f32.partialorder %v1128, 0.0004427343
    %v1130 = vsel %vm1129, %v1127, %v1124
    %v1131 = vadd.f32 %v1117, %v1130
    %v1132 = vld [vmem:[%s12] sm:$0x1]
    %v1133 = vmul.f32 %v1131, %v1132
    %v1134 = vadd.f32 %v1115, %v1133
    %v1136 = vperm.slane %v1134, 0
    %1138 = vmatpush.bf16.msra.mxu0 %v1114
    %1139 = vmatpush.bf16.msra.mxu0 %v1113
    %1140 = vmatpush.bf16.msra.mxu0 %v1112
    %1141 = vmatpush.bf16.msra.mxu0 %v1111
    %1142 = vmatpush.bf16.msra.mxu0 %v1110
    %1143 = vmatpush.bf16.msra.mxu0 %v1109
    %1144 = vmatpush.bf16.msra.mxu0 %v1108
    %1145 = vmatpush.bf16.msra.mxu0 %v1107
    %1146 = vmatmul.bf16.gmra.mxu0 %v783
    %v1147 = vpop.f32.mrf.mxu0
    %v1148 = vadd.f32 %v1136, %v1147
    %v1149 = vpop.f32.mrf.mxu0
    %v1150 = vadd.f32 %v1136, %v1149
    %1151 = vmatmul.bf16.gmra.mxu0 %v784
    %v1152 = vpop.f32.mrf.mxu0
    %v1153 = vadd.f32 %v1136, %v1152
    %v1154 = vpop.f32.mrf.mxu0
    %v1155 = vadd.f32 %v1136, %v1154
    %1156 = vmatmul.bf16.gmra.mxu0 %v785
    %v1157 = vpop.f32.mrf.mxu0
    %v1158 = vadd.f32 %v1136, %v1157
    %v1159 = vpop.f32.mrf.mxu0
    %v1160 = vadd.f32 %v1136, %v1159
    %1161 = vmatmul.bf16.gmra.mxu0 %v786
    %v1162 = vpop.f32.mrf.mxu0
    %v1163 = vadd.f32 %v1136, %v1162
    %v1164 = vpop.f32.mrf.mxu0
    %v1165 = vadd.f32 %v1136, %v1164
    %1166 = vdwg.mxu0
    %v1167 = vxor.u32 %v1148, 2147483648
    %v1168 = vxor.u32 %v1150, 2147483648
    %v1169 = vxor.u32 %v1153, 2147483648
    %v1170 = vxor.u32 %v1155, 2147483648
    %v1171 = vxor.u32 %v1158, 2147483648
    %v1172 = vxor.u32 %v1160, 2147483648
    %v1173 = vxor.u32 %v1163, 2147483648
    %v1174 = vxor.u32 %v1165, 2147483648
    %v1175 = vmul.f32 %v1167, 1.442695
    %v1176 = vpow.pop %v1175
    %v1177 = vmul.f32 %v1168, 1.442695
    %v1178 = vpow.pop %v1177
    %v1179 = vmul.f32 %v1169, 1.442695
    %v1180 = vpow.pop %v1179
    %v1181 = vmul.f32 %v1170, 1.442695
    %v1182 = vpow.pop %v1181
    %v1183 = vmul.f32 %v1171, 1.442695
    %v1184 = vpow.pop %v1183
    %v1185 = vmul.f32 %v1172, 1.442695
    %v1186 = vpow.pop %v1185
    %v1187 = vmul.f32 %v1173, 1.442695
    %v1188 = vpow.pop %v1187
    %v1189 = vmul.f32 %v1174, 1.442695
    %v1190 = vpow.pop %v1189
    %v1191 = vadd.f32 %v1176, 1.0
    %v1192 = vadd.f32 %v1178, 1.0
    %v1193 = vadd.f32 %v1180, 1.0
    %v1194 = vadd.f32 %v1182, 1.0
    %v1195 = vadd.f32 %v1184, 1.0
    %v1196 = vadd.f32 %v1186, 1.0
    %v1197 = vadd.f32 %v1188, 1.0
    %v1198 = vadd.f32 %v1190, 1.0
    %v1199 = vrcp.pop %v1191
    %v1200 = vmul.f32 %v1191, %v1199
    %v1201 = vsub.f32 1.0, %v1200
    %v1202 = vmul.f32 %v1199, %v1201
    %v1203 = vadd.f32 %v1199, %v1202
    %vm1204 = vweird.f32 %v1191
    %vm1205 = vweird.f32 %v1199
    %vm1206 = vmor %vm1204, %vm1205
    %v1207 = vsel %vm1206, %v1199, %v1203
    %v1208 = vand.u32 2147483647, %v1191
    %vm1209 = vcmp.eq.f32.partialorder %v1208, 8.507059e+37
    %v1210 = vand.u32 %v1191, 2147483648
    %v1211 = vor.u32 1.1754944e-38, %v1210
    %v1212 = vsel %vm1209, %v1211, %v1207
    %v1213 = vmul.f32 1.0, %v1212
    %v1214 = vrcp.pop %v1192
    %v1215 = vmul.f32 %v1192, %v1214
    %v1216 = vsub.f32 1.0, %v1215
    %v1217 = vmul.f32 %v1214, %v1216
    %v1218 = vadd.f32 %v1214, %v1217
    %vm1219 = vweird.f32 %v1192
    %vm1220 = vweird.f32 %v1214
    %vm1221 = vmor %vm1219, %vm1220
    %v1222 = vsel %vm1221, %v1214, %v1218
    %v1223 = vand.u32 2147483647, %v1192
    %vm1224 = vcmp.eq.f32.partialorder %v1223, 8.507059e+37
    %v1225 = vand.u32 %v1192, 2147483648
    %v1226 = vor.u32 1.1754944e-38, %v1225
    %v1227 = vsel %vm1224, %v1226, %v1222
    %v1228 = vmul.f32 1.0, %v1227
    %v1229 = vrcp.pop %v1193
    %v1230 = vmul.f32 %v1193, %v1229
    %v1231 = vsub.f32 1.0, %v1230
    %v1232 = vmul.f32 %v1229, %v1231
    %v1233 = vadd.f32 %v1229, %v1232
    %vm1234 = vweird.f32 %v1193
    %vm1235 = vweird.f32 %v1229
    %vm1236 = vmor %vm1234, %vm1235
    %v1237 = vsel %vm1236, %v1229, %v1233
    %v1238 = vand.u32 2147483647, %v1193
    %vm1239 = vcmp.eq.f32.partialorder %v1238, 8.507059e+37
    %v1240 = vand.u32 %v1193, 2147483648
    %v1241 = vor.u32 1.1754944e-38, %v1240
    %v1242 = vsel %vm1239, %v1241, %v1237
    %v1243 = vmul.f32 1.0, %v1242
    %v1244 = vrcp.pop %v1194
    %v1245 = vmul.f32 %v1194, %v1244
    %v1246 = vsub.f32 1.0, %v1245
    %v1247 = vmul.f32 %v1244, %v1246
    %v1248 = vadd.f32 %v1244, %v1247
    %vm1249 = vweird.f32 %v1194
    %vm1250 = vweird.f32 %v1244
    %vm1251 = vmor %vm1249, %vm1250
    %v1252 = vsel %vm1251, %v1244, %v1248
    %v1253 = vand.u32 2147483647, %v1194
    %vm1254 = vcmp.eq.f32.partialorder %v1253, 8.507059e+37
    %v1255 = vand.u32 %v1194, 2147483648
    %v1256 = vor.u32 1.1754944e-38, %v1255
    %v1257 = vsel %vm1254, %v1256, %v1252
    %v1258 = vmul.f32 1.0, %v1257
    %v1259 = vrcp.pop %v1195
    %v1260 = vmul.f32 %v1195, %v1259
    %v1261 = vsub.f32 1.0, %v1260
    %v1262 = vmul.f32 %v1259, %v1261
    %v1263 = vadd.f32 %v1259, %v1262
    %vm1264 = vweird.f32 %v1195
    %vm1265 = vweird.f32 %v1259
    %vm1266 = vmor %vm1264, %vm1265
    %v1267 = vsel %vm1266, %v1259, %v1263
    %v1268 = vand.u32 2147483647, %v1195
    %vm1269 = vcmp.eq.f32.partialorder %v1268, 8.507059e+37
    %v1270 = vand.u32 %v1195, 2147483648
    %v1271 = vor.u32 1.1754944e-38, %v1270
    %v1272 = vsel %vm1269, %v1271, %v1267
    %v1273 = vmul.f32 1.0, %v1272
    %v1274 = vrcp.pop %v1196
    %v1275 = vmul.f32 %v1196, %v1274
    %v1276 = vsub.f32 1.0, %v1275
    %v1277 = vmul.f32 %v1274, %v1276
    %v1278 = vadd.f32 %v1274, %v1277
    %vm1279 = vweird.f32 %v1196
    %vm1280 = vweird.f32 %v1274
    %vm1281 = vmor %vm1279, %vm1280
    %v1282 = vsel %vm1281, %v1274, %v1278
    %v1283 = vand.u32 2147483647, %v1196
    %vm1284 = vcmp.eq.f32.partialorder %v1283, 8.507059e+37
    %v1285 = vand.u32 %v1196, 2147483648
    %v1286 = vor.u32 1.1754944e-38, %v1285
    %v1287 = vsel %vm1284, %v1286, %v1282
    %v1288 = vmul.f32 1.0, %v1287
    %v1289 = vrcp.pop %v1197
    %v1290 = vmul.f32 %v1197, %v1289
    %v1291 = vsub.f32 1.0, %v1290
    %v1292 = vmul.f32 %v1289, %v1291
    %v1293 = vadd.f32 %v1289, %v1292
    %vm1294 = vweird.f32 %v1197
    %vm1295 = vweird.f32 %v1289
    %vm1296 = vmor %vm1294, %vm1295
    %v1297 = vsel %vm1296, %v1289, %v1293
    %v1298 = vand.u32 2147483647, %v1197
    %vm1299 = vcmp.eq.f32.partialorder %v1298, 8.507059e+37
    %v1300 = vand.u32 %v1197, 2147483648
    %v1301 = vor.u32 1.1754944e-38, %v1300
    %v1302 = vsel %vm1299, %v1301, %v1297
    %v1303 = vmul.f32 1.0, %v1302
    %v1304 = vrcp.pop %v1198
    %v1305 = vmul.f32 %v1198, %v1304
    %v1306 = vsub.f32 1.0, %v1305
    %v1307 = vmul.f32 %v1304, %v1306
    %v1308 = vadd.f32 %v1304, %v1307
    %vm1309 = vweird.f32 %v1198
    %vm1310 = vweird.f32 %v1304
    %vm1311 = vmor %vm1309, %vm1310
    %v1312 = vsel %vm1311, %v1304, %v1308
    %v1313 = vand.u32 2147483647, %v1198
    %vm1314 = vcmp.eq.f32.partialorder %v1313, 8.507059e+37
    %v1315 = vand.u32 %v1198, 2147483648
    %v1316 = vor.u32 1.1754944e-38, %v1315
    %v1317 = vsel %vm1314, %v1316, %v1312
    %v1318 = vmul.f32 1.0, %v1317
    %v1319 = vpack.c.bf16 %v1228, %v1213
    %v1320 = vpack.c.bf16 %v1258, %v1243
    %v1321 = vpack.c.bf16 %v1288, %v1273
    %v1322 = vpack.c.bf16 %v1318, %v1303
    %v1323 = vld [vmem:[#allocation14] sm:$0xff]
    %v1324 = vld [vmem:[#allocation14 + $0x8] sm:$0xff]
    %v1325 = vld [vmem:[#allocation14 + $0x10] sm:$0xff]
    %v1326 = vld [vmem:[#allocation14 + $0x18] sm:$0xff]
    %v1327 = vld [vmem:[#allocation14 + $0x20] sm:$0xff]
    %v1328 = vld [vmem:[#allocation14 + $0x28] sm:$0xff]
    %v1329 = vld [vmem:[#allocation14 + $0x30] sm:$0xff]
    %v1330 = vld [vmem:[#allocation14 + $0x38] sm:$0xff]
    %v1331 = vld [vmem:[#allocation14 + $0x40] sm:$0xff]
    %v1332 = vld [vmem:[#allocation14 + $0x48] sm:$0xff]
    %v1333 = vld [vmem:[#allocation14 + $0x50] sm:$0xff]
    %v1334 = vld [vmem:[#allocation14 + $0x58] sm:$0xff]
    %v1335 = vld [vmem:[#allocation14 + $0x60] sm:$0xff]
    %v1336 = vld [vmem:[#allocation14 + $0x68] sm:$0xff]
    %v1337 = vld [vmem:[#allocation14 + $0x70] sm:$0xff]
    %v1338 = vld [vmem:[#allocation14 + $0x78] sm:$0xff]
    %v1339 = vld [vmem:[#allocation16] sm:$0xff]
    %v1340 = vld [vmem:[#allocation16 + $0x8] sm:$0xff]
    %v1341 = vld [vmem:[#allocation16 + $0x10] sm:$0xff]
    %v1342 = vld [vmem:[#allocation16 + $0x18] sm:$0xff]
    %v1343 = vld [vmem:[#allocation16 + $0x20] sm:$0xff]
    %v1344 = vld [vmem:[#allocation16 + $0x28] sm:$0xff]
    %v1345 = vld [vmem:[#allocation16 + $0x30] sm:$0xff]
    %v1346 = vld [vmem:[#allocation16 + $0x38] sm:$0xff]
    %v1347 = vld [vmem:[#allocation16 + $0x40] sm:$0xff]
    %v1348 = vld [vmem:[#allocation16 + $0x48] sm:$0xff]
    %v1349 = vld [vmem:[#allocation16 + $0x50] sm:$0xff]
    %v1350 = vld [vmem:[#allocation16 + $0x58] sm:$0xff]
    %v1351 = vld [vmem:[#allocation16 + $0x60] sm:$0xff]
    %v1352 = vld [vmem:[#allocation16 + $0x68] sm:$0xff]
    %v1353 = vld [vmem:[#allocation16 + $0x70] sm:$0xff]
    %v1354 = vld [vmem:[#allocation16 + $0x78] sm:$0xff]
    %v1355 = vmax.f32 %v1339, 0.0
    %v1356 = vmax.f32 %v1340, 0.0
    %v1357 = vmax.f32 %v1341, 0.0
    %v1358 = vmax.f32 %v1342, 0.0
    %v1359 = vmax.f32 %v1343, 0.0
    %v1360 = vmax.f32 %v1344, 0.0
    %v1361 = vmax.f32 %v1345, 0.0
    %v1362 = vmax.f32 %v1346, 0.0
    %v1363 = vmax.f32 %v1347, 0.0
    %v1364 = vmax.f32 %v1348, 0.0
    %v1365 = vmax.f32 %v1349, 0.0
    %v1366 = vmax.f32 %v1350, 0.0
    %v1367 = vmax.f32 %v1351, 0.0
    %v1368 = vmax.f32 %v1352, 0.0
    %v1369 = vmax.f32 %v1353, 0.0
    %v1370 = vmax.f32 %v1354, 0.0
    %v1371 = vand.u32 2147483647, %v1339
    %v1372 = vand.u32 2147483647, %v1340
    %v1373 = vand.u32 2147483647, %v1341
    %v1374 = vand.u32 2147483647, %v1342
    %v1375 = vand.u32 2147483647, %v1343
    %v1376 = vand.u32 2147483647, %v1344
    %v1377 = vand.u32 2147483647, %v1345
    %v1378 = vand.u32 2147483647, %v1346
    %v1379 = vand.u32 2147483647, %v1347
    %v1380 = vand.u32 2147483647, %v1348
    %v1381 = vand.u32 2147483647, %v1349
    %v1382 = vand.u32 2147483647, %v1350
    %v1383 = vand.u32 2147483647, %v1351
    %v1384 = vand.u32 2147483647, %v1352
    %v1385 = vand.u32 2147483647, %v1353
    %v1386 = vand.u32 2147483647, %v1354
    %v1387 = vsub.f32 0.0, %v1371
    %v1388 = vsub.f32 0.0, %v1372
    %v1389 = vsub.f32 0.0, %v1373
    %v1390 = vsub.f32 0.0, %v1374
    %v1391 = vsub.f32 0.0, %v1375
    %v1392 = vsub.f32 0.0, %v1376
    %v1393 = vsub.f32 0.0, %v1377
    %v1394 = vsub.f32 0.0, %v1378
    %v1395 = vsub.f32 0.0, %v1379
    %v1396 = vsub.f32 0.0, %v1380
    %v1397 = vsub.f32 0.0, %v1381
    %v1398 = vsub.f32 0.0, %v1382
    %v1399 = vsub.f32 0.0, %v1383
    %v1400 = vsub.f32 0.0, %v1384
    %v1401 = vsub.f32 0.0, %v1385
    %v1402 = vsub.f32 0.0, %v1386
    %v1403 = vmul.f32 %v1387, 1.442695
    %v1404 = vpow.pop %v1403
    %v1405 = vmul.f32 %v1388, 1.442695
    %v1406 = vpow.pop %v1405
    %v1407 = vmul.f32 %v1389, 1.442695
    %v1408 = vpow.pop %v1407
    %v1409 = vmul.f32 %v1390, 1.442695
    %v1410 = vpow.pop %v1409
    %v1411 = vmul.f32 %v1391, 1.442695
    %v1412 = vpow.pop %v1411
    %v1413 = vmul.f32 %v1392, 1.442695
    %v1414 = vpow.pop %v1413
    %v1415 = vmul.f32 %v1393, 1.442695
    %v1416 = vpow.pop %v1415
    %v1417 = vmul.f32 %v1394, 1.442695
    %v1418 = vpow.pop %v1417
    %v1419 = vmul.f32 %v1395, 1.442695
    %v1420 = vpow.pop %v1419
    %v1421 = vmul.f32 %v1396, 1.442695
    %v1422 = vpow.pop %v1421
    %v1423 = vmul.f32 %v1397, 1.442695
    %v1424 = vpow.pop %v1423
    %v1425 = vmul.f32 %v1398, 1.442695
    %v1426 = vpow.pop %v1425
    %v1427 = vmul.f32 %v1399, 1.442695
    %v1428 = vpow.pop %v1427
    %v1429 = vmul.f32 %v1400, 1.442695
    %v1430 = vpow.pop %v1429
    %v1431 = vmul.f32 %v1401, 1.442695
    %v1432 = vpow.pop %v1431
    %v1433 = vmul.f32 %v1402, 1.442695
    %v1434 = vpow.pop %v1433
    %v1435 = vadd.f32 %v1404, 1.0
    %v1436 = vlog2.pop %v1435
    %v1437 = vmul.f32 %v1436, 0.6931472
    %v1438 = vmul.f32 -0.5, %v1404
    %v1439 = vadd.f32 %v1438, 1.0
    %v1440 = vmul.f32 %v1439, %v1404
    %v1441 = vand.u32 2147483647, %v1404
    %vm1442 = vcmp.lt.f32.partialorder %v1441, 0.0004427343
    %v1443 = vsel %vm1442, %v1440, %v1437
    %v1444 = vadd.f32 %v1406, 1.0
    %v1445 = vlog2.pop %v1444
    %v1446 = vmul.f32 %v1445, 0.6931472
    %v1447 = vmul.f32 -0.5, %v1406
    %v1448 = vadd.f32 %v1447, 1.0
    %v1449 = vmul.f32 %v1448, %v1406
    %v1450 = vand.u32 2147483647, %v1406
    %vm1451 = vcmp.lt.f32.partialorder %v1450, 0.0004427343
    %v1452 = vsel %vm1451, %v1449, %v1446
    %v1453 = vadd.f32 %v1408, 1.0
    %v1454 = vlog2.pop %v1453
    %v1455 = vmul.f32 %v1454, 0.6931472
    %v1456 = vmul.f32 -0.5, %v1408
    %v1457 = vadd.f32 %v1456, 1.0
    %v1458 = vmul.f32 %v1457, %v1408
    %v1459 = vand.u32 2147483647, %v1408
    %vm1460 = vcmp.lt.f32.partialorder %v1459, 0.0004427343
    %v1461 = vsel %vm1460, %v1458, %v1455
    %v1462 = vadd.f32 %v1410, 1.0
    %v1463 = vlog2.pop %v1462
    %v1464 = vmul.f32 %v1463, 0.6931472
    %v1465 = vmul.f32 -0.5, %v1410
    %v1466 = vadd.f32 %v1465, 1.0
    %v1467 = vmul.f32 %v1466, %v1410
    %v1468 = vand.u32 2147483647, %v1410
    %vm1469 = vcmp.lt.f32.partialorder %v1468, 0.0004427343
    %v1470 = vsel %vm1469, %v1467, %v1464
    %v1471 = vadd.f32 %v1412, 1.0
    %v1472 = vlog2.pop %v1471
    %v1473 = vmul.f32 %v1472, 0.6931472
    %v1474 = vmul.f32 -0.5, %v1412
    %v1475 = vadd.f32 %v1474, 1.0
    %v1476 = vmul.f32 %v1475, %v1412
    %v1477 = vand.u32 2147483647, %v1412
    %vm1478 = vcmp.lt.f32.partialorder %v1477, 0.0004427343
    %v1479 = vsel %vm1478, %v1476, %v1473
    %v1480 = vadd.f32 %v1414, 1.0
    %v1481 = vlog2.pop %v1480
    %v1482 = vmul.f32 %v1481, 0.6931472
    %v1483 = vmul.f32 -0.5, %v1414
    %v1484 = vadd.f32 %v1483, 1.0
    %v1485 = vmul.f32 %v1484, %v1414
    %v1486 = vand.u32 2147483647, %v1414
    %vm1487 = vcmp.lt.f32.partialorder %v1486, 0.0004427343
    %v1488 = vsel %vm1487, %v1485, %v1482
    %v1489 = vadd.f32 %v1416, 1.0
    %v1490 = vlog2.pop %v1489
    %v1491 = vmul.f32 %v1490, 0.6931472
    %v1492 = vmul.f32 -0.5, %v1416
    %v1493 = vadd.f32 %v1492, 1.0
    %v1494 = vmul.f32 %v1493, %v1416
    %v1495 = vand.u32 2147483647, %v1416
    %vm1496 = vcmp.lt.f32.partialorder %v1495, 0.0004427343
    %v1497 = vsel %vm1496, %v1494, %v1491
    %v1498 = vadd.f32 %v1418, 1.0
    %v1499 = vlog2.pop %v1498
    %v1500 = vmul.f32 %v1499, 0.6931472
    %v1501 = vmul.f32 -0.5, %v1418
    %v1502 = vadd.f32 %v1501, 1.0
    %v1503 = vmul.f32 %v1502, %v1418
    %v1504 = vand.u32 2147483647, %v1418
    %vm1505 = vcmp.lt.f32.partialorder %v1504, 0.0004427343
    %v1506 = vsel %vm1505, %v1503, %v1500
    %v1507 = vadd.f32 %v1420, 1.0
    %v1508 = vlog2.pop %v1507
    %v1509 = vmul.f32 %v1508, 0.6931472
    %v1510 = vmul.f32 -0.5, %v1420
    %v1511 = vadd.f32 %v1510, 1.0
    %v1512 = vmul.f32 %v1511, %v1420
    %v1513 = vand.u32 2147483647, %v1420
    %vm1514 = vcmp.lt.f32.partialorder %v1513, 0.0004427343
    %v1515 = vsel %vm1514, %v1512, %v1509
    %v1516 = vadd.f32 %v1422, 1.0
    %v1517 = vlog2.pop %v1516
    %v1518 = vmul.f32 %v1517, 0.6931472
    %v1519 = vmul.f32 -0.5, %v1422
    %v1520 = vadd.f32 %v1519, 1.0
    %v1521 = vmul.f32 %v1520, %v1422
    %v1522 = vand.u32 2147483647, %v1422
    %vm1523 = vcmp.lt.f32.partialorder %v1522, 0.0004427343
    %v1524 = vsel %vm1523, %v1521, %v1518
    %v1525 = vadd.f32 %v1424, 1.0
    %v1526 = vlog2.pop %v1525
    %v1527 = vmul.f32 %v1526, 0.6931472
    %v1528 = vmul.f32 -0.5, %v1424
    %v1529 = vadd.f32 %v1528, 1.0
    %v1530 = vmul.f32 %v1529, %v1424
    %v1531 = vand.u32 2147483647, %v1424
    %vm1532 = vcmp.lt.f32.partialorder %v1531, 0.0004427343
    %v1533 = vsel %vm1532, %v1530, %v1527
    %v1534 = vadd.f32 %v1426, 1.0
    %v1535 = vlog2.pop %v1534
    %v1536 = vmul.f32 %v1535, 0.6931472
    %v1537 = vmul.f32 -0.5, %v1426
    %v1538 = vadd.f32 %v1537, 1.0
    %v1539 = vmul.f32 %v1538, %v1426
    %v1540 = vand.u32 2147483647, %v1426
    %vm1541 = vcmp.lt.f32.partialorder %v1540, 0.0004427343
    %v1542 = vsel %vm1541, %v1539, %v1536
    %v1543 = vadd.f32 %v1428, 1.0
    %v1544 = vlog2.pop %v1543
    %v1545 = vmul.f32 %v1544, 0.6931472
    %v1546 = vmul.f32 -0.5, %v1428
    %v1547 = vadd.f32 %v1546, 1.0
    %v1548 = vmul.f32 %v1547, %v1428
    %v1549 = vand.u32 2147483647, %v1428
    %vm1550 = vcmp.lt.f32.partialorder %v1549, 0.0004427343
    %v1551 = vsel %vm1550, %v1548, %v1545
    %v1552 = vadd.f32 %v1430, 1.0
    %v1553 = vlog2.pop %v1552
    %v1554 = vmul.f32 %v1553, 0.6931472
    %v1555 = vmul.f32 -0.5, %v1430
    %v1556 = vadd.f32 %v1555, 1.0
    %v1557 = vmul.f32 %v1556, %v1430
    %v1558 = vand.u32 2147483647, %v1430
    %vm1559 = vcmp.lt.f32.partialorder %v1558, 0.0004427343
    %v1560 = vsel %vm1559, %v1557, %v1554
    %v1561 = vadd.f32 %v1432, 1.0
    %v1562 = vlog2.pop %v1561
    %v1563 = vmul.f32 %v1562, 0.6931472
    %v1564 = vmul.f32 -0.5, %v1432
    %v1565 = vadd.f32 %v1564, 1.0
    %v1566 = vmul.f32 %v1565, %v1432
    %v1567 = vand.u32 2147483647, %v1432
    %vm1568 = vcmp.lt.f32.partialorder %v1567, 0.0004427343
    %v1569 = vsel %vm1568, %v1566, %v1563
    %v1570 = vadd.f32 %v1434, 1.0
    %v1571 = vlog2.pop %v1570
    %v1572 = vmul.f32 %v1571, 0.6931472
    %v1573 = vmul.f32 -0.5, %v1434
    %v1574 = vadd.f32 %v1573, 1.0
    %v1575 = vmul.f32 %v1574, %v1434
    %v1576 = vand.u32 2147483647, %v1434
    %vm1577 = vcmp.lt.f32.partialorder %v1576, 0.0004427343
    %v1578 = vsel %vm1577, %v1575, %v1572
    %v1579 = vadd.f32 %v1355, %v1443
    %v1580 = vadd.f32 %v1356, %v1452
    %v1581 = vadd.f32 %v1357, %v1461
    %v1582 = vadd.f32 %v1358, %v1470
    %v1583 = vadd.f32 %v1359, %v1479
    %v1584 = vadd.f32 %v1360, %v1488
    %v1585 = vadd.f32 %v1361, %v1497
    %v1586 = vadd.f32 %v1362, %v1506
    %v1587 = vadd.f32 %v1363, %v1515
    %v1588 = vadd.f32 %v1364, %v1524
    %v1589 = vadd.f32 %v1365, %v1533
    %v1590 = vadd.f32 %v1366, %v1542
    %v1591 = vadd.f32 %v1367, %v1551
    %v1592 = vadd.f32 %v1368, %v1560
    %v1593 = vadd.f32 %v1369, %v1569
    %v1594 = vadd.f32 %v1370, %v1578
    %v1595 = vld [vmem:[#allocation17] sm:$0xff]
    %v1596 = vld [vmem:[#allocation17 + $0x8] sm:$0xff]
    %v1597 = vld [vmem:[#allocation17 + $0x10] sm:$0xff]
    %v1598 = vld [vmem:[#allocation17 + $0x18] sm:$0xff]
    %v1599 = vld [vmem:[#allocation17 + $0x20] sm:$0xff]
    %v1600 = vld [vmem:[#allocation17 + $0x28] sm:$0xff]
    %v1601 = vld [vmem:[#allocation17 + $0x30] sm:$0xff]
    %v1602 = vld [vmem:[#allocation17 + $0x38] sm:$0xff]
    %v1603 = vld [vmem:[#allocation17 + $0x40] sm:$0xff]
    %v1604 = vld [vmem:[#allocation17 + $0x48] sm:$0xff]
    %v1605 = vld [vmem:[#allocation17 + $0x50] sm:$0xff]
    %v1606 = vld [vmem:[#allocation17 + $0x58] sm:$0xff]
    %v1607 = vld [vmem:[#allocation17 + $0x60] sm:$0xff]
    %v1608 = vld [vmem:[#allocation17 + $0x68] sm:$0xff]
    %v1609 = vld [vmem:[#allocation17 + $0x70] sm:$0xff]
    %v1610 = vld [vmem:[#allocation17 + $0x78] sm:$0xff]
    %v1611 = vmul.f32 %v1579, %v1595
    %v1612 = vmul.f32 %v1580, %v1596
    %v1613 = vmul.f32 %v1581, %v1597
    %v1614 = vmul.f32 %v1582, %v1598
    %v1615 = vmul.f32 %v1583, %v1599
    %v1616 = vmul.f32 %v1584, %v1600
    %v1617 = vmul.f32 %v1585, %v1601
    %v1618 = vmul.f32 %v1586, %v1602
    %v1619 = vmul.f32 %v1587, %v1603
    %v1620 = vmul.f32 %v1588, %v1604
    %v1621 = vmul.f32 %v1589, %v1605
    %v1622 = vmul.f32 %v1590, %v1606
    %v1623 = vmul.f32 %v1591, %v1607
    %v1624 = vmul.f32 %v1592, %v1608
    %v1625 = vmul.f32 %v1593, %v1609
    %v1626 = vmul.f32 %v1594, %v1610
    %v1627 = vadd.f32 %v1323, %v1611
    %v1628 = vadd.f32 %v1324, %v1612
    %v1629 = vadd.f32 %v1325, %v1613
    %v1630 = vadd.f32 %v1326, %v1614
    %v1631 = vadd.f32 %v1327, %v1615
    %v1632 = vadd.f32 %v1328, %v1616
    %v1633 = vadd.f32 %v1329, %v1617
    %v1634 = vadd.f32 %v1330, %v1618
    %v1635 = vadd.f32 %v1331, %v1619
    %v1636 = vadd.f32 %v1332, %v1620
    %v1637 = vadd.f32 %v1333, %v1621
    %v1638 = vadd.f32 %v1334, %v1622
    %v1639 = vadd.f32 %v1335, %v1623
    %v1640 = vadd.f32 %v1336, %v1624
    %v1641 = vadd.f32 %v1337, %v1625
    %v1642 = vadd.f32 %v1338, %v1626
    %v1643 = vpack.c.bf16 %v1628, %v1627
    %v1644 = vpack.c.bf16 %v1630, %v1629
    %v1645 = vpack.c.bf16 %v1632, %v1631
    %v1646 = vpack.c.bf16 %v1634, %v1633
    %v1647 = vpack.c.bf16 %v1636, %v1635
    %v1648 = vpack.c.bf16 %v1638, %v1637
    %v1649 = vpack.c.bf16 %v1640, %v1639
    %v1650 = vpack.c.bf16 %v1642, %v1641
    %v1651 = vld [vmem:[%s16] sm:$0x1]
    %v1652 = vld [vmem:[%s17] sm:$0x1]
    %v1653 = vmax.f32 %v1652, 0.0
    %v1654 = vand.u32 2147483647, %v1652
    %v1655 = vsub.f32 0.0, %v1654
    %v1656 = vmul.f32 %v1655, 1.442695
    %v1657 = vpow.pop %v1656
    %v1658 = vadd.f32 %v1657, 1.0
    %v1659 = vlog2.pop %v1658
    %v1660 = vmul.f32 %v1659, 0.6931472
    %v1661 = vmul.f32 -0.5, %v1657
    %v1662 = vadd.f32 %v1661, 1.0
    %v1663 = vmul.f32 %v1662, %v1657
    %v1664 = vand.u32 2147483647, %v1657
    %vm1665 = vcmp.lt.f32.partialorder %v1664, 0.0004427343
    %v1666 = vsel %vm1665, %v1663, %v1660
    %v1667 = vadd.f32 %v1653, %v1666
    %v1668 = vld [vmem:[%s18] sm:$0x1]
    %v1669 = vmul.f32 %v1667, %v1668
    %v1670 = vadd.f32 %v1651, %v1669
    %v1672 = vperm.slane %v1670, 0
    %1674 = vmatpush.bf16.msra.mxu0 %v1650
    %1675 = vmatpush.bf16.msra.mxu0 %v1649
    %1676 = vmatpush.bf16.msra.mxu0 %v1648
    %1677 = vmatpush.bf16.msra.mxu0 %v1647
    %1678 = vmatpush.bf16.msra.mxu0 %v1646
    %1679 = vmatpush.bf16.msra.mxu0 %v1645
    %1680 = vmatpush.bf16.msra.mxu0 %v1644
    %1681 = vmatpush.bf16.msra.mxu0 %v1643
    %1682 = vmatmul.bf16.gmra.mxu0 %v1319
    %v1683 = vpop.f32.mrf.mxu0
    %v1684 = vadd.f32 %v1672, %v1683
    %v1685 = vpop.f32.mrf.mxu0
    %v1686 = vadd.f32 %v1672, %v1685
    %1687 = vmatmul.bf16.gmra.mxu0 %v1320
    %v1688 = vpop.f32.mrf.mxu0
    %v1689 = vadd.f32 %v1672, %v1688
    %v1690 = vpop.f32.mrf.mxu0
    %v1691 = vadd.f32 %v1672, %v1690
    %1692 = vmatmul.bf16.gmra.mxu0 %v1321
    %v1693 = vpop.f32.mrf.mxu0
    %v1694 = vadd.f32 %v1672, %v1693
    %v1695 = vpop.f32.mrf.mxu0
    %v1696 = vadd.f32 %v1672, %v1695
    %1697 = vmatmul.bf16.gmra.mxu0 %v1322
    %v1698 = vpop.f32.mrf.mxu0
    %v1699 = vadd.f32 %v1672, %v1698
    %v1700 = vpop.f32.mrf.mxu0
    %v1701 = vadd.f32 %v1672, %v1700
    %1702 = vdwg.mxu0
    %1703 = vmax.xlane.f32.xlu0 %v1684
    %v1704 = vpop.xlane.xlu0 %1703
    %1705 = vmax.xlane.f32.xlu0 %v1686
    %v1706 = vpop.xlane.xlu0 %1705
    %1707 = vmax.xlane.f32.xlu0 %v1689
    %v1708 = vpop.xlane.xlu0 %1707
    %1709 = vmax.xlane.f32.xlu0 %v1691
    %v1710 = vpop.xlane.xlu0 %1709
    %1711 = vmax.xlane.f32.xlu0 %v1694
    %v1712 = vpop.xlane.xlu0 %1711
    %1713 = vmax.xlane.f32.xlu0 %v1696
    %v1714 = vpop.xlane.xlu0 %1713
    %1715 = vmax.xlane.f32.xlu0 %v1699
    %v1716 = vpop.xlane.xlu0 %1715
    %1717 = vmax.xlane.f32.xlu0 %v1701
    %v1718 = vpop.xlane.xlu0 %1717
    %v1719 = vsub.f32 %v1684, %v1704
    %v1720 = vsub.f32 %v1686, %v1706
    %v1721 = vsub.f32 %v1689, %v1708
    %v1722 = vsub.f32 %v1691, %v1710
    %v1723 = vsub.f32 %v1694, %v1712
    %v1724 = vsub.f32 %v1696, %v1714
    %v1725 = vsub.f32 %v1699, %v1716
    %v1726 = vsub.f32 %v1701, %v1718
    %v1727 = vmul.f32 %v1719, 1.442695
    %v1728 = vpow.pop %v1727
    %v1729 = vmul.f32 %v1720, 1.442695
    %v1730 = vpow.pop %v1729
    %v1731 = vmul.f32 %v1721, 1.442695
    %v1732 = vpow.pop %v1731
    %v1733 = vmul.f32 %v1722, 1.442695
    %v1734 = vpow.pop %v1733
    %v1735 = vmul.f32 %v1723, 1.442695
    %v1736 = vpow.pop %v1735
    %v1737 = vmul.f32 %v1724, 1.442695
    %v1738 = vpow.pop %v1737
    %v1739 = vmul.f32 %v1725, 1.442695
    %v1740 = vpow.pop %v1739
    %v1741 = vmul.f32 %v1726, 1.442695
    %v1742 = vpow.pop %v1741
    %1743 = vadd.xlane.f32.xlu0 %v1728
    %v1744 = vpop.xlane.xlu0 %1743
    %1745 = vadd.xlane.f32.xlu0 %v1730
    %v1746 = vpop.xlane.xlu0 %1745
    %1747 = vadd.xlane.f32.xlu0 %v1732
    %v1748 = vpop.xlane.xlu0 %1747
    %1749 = vadd.xlane.f32.xlu0 %v1734
    %v1750 = vpop.xlane.xlu0 %1749
    %1751 = vadd.xlane.f32.xlu0 %v1736
    %v1752 = vpop.xlane.xlu0 %1751
    %1753 = vadd.xlane.f32.xlu0 %v1738
    %v1754 = vpop.xlane.xlu0 %1753
    %1755 = vadd.xlane.f32.xlu0 %v1740
    %v1756 = vpop.xlane.xlu0 %1755
    %1757 = vadd.xlane.f32.xlu0 %v1742
    %v1758 = vpop.xlane.xlu0 %1757
    %v1759 = vrcp.pop %v1744
    %v1760 = vmul.f32 %v1744, %v1759
    %v1761 = vsub.f32 1.0, %v1760
    %v1762 = vmul.f32 %v1759, %v1761
    %v1763 = vadd.f32 %v1759, %v1762
    %vm1764 = vweird.f32 %v1744
    %vm1765 = vweird.f32 %v1759
    %vm1766 = vmor %vm1764, %vm1765
    %v1767 = vsel %vm1766, %v1759, %v1763
    %v1768 = vand.u32 2147483647, %v1744
    %vm1769 = vcmp.eq.f32.partialorder %v1768, 8.507059e+37
    %v1770 = vand.u32 %v1744, 2147483648
    %v1771 = vor.u32 1.1754944e-38, %v1770
    %v1772 = vsel %vm1769, %v1771, %v1767
    %v1773 = vmul.f32 %v1728, %v1772
    %v1774 = vrcp.pop %v1746
    %v1775 = vmul.f32 %v1746, %v1774
    %v1776 = vsub.f32 1.0, %v1775
    %v1777 = vmul.f32 %v1774, %v1776
    %v1778 = vadd.f32 %v1774, %v1777
    %vm1779 = vweird.f32 %v1746
    %vm1780 = vweird.f32 %v1774
    %vm1781 = vmor %vm1779, %vm1780
    %v1782 = vsel %vm1781, %v1774, %v1778
    %v1783 = vand.u32 2147483647, %v1746
    %vm1784 = vcmp.eq.f32.partialorder %v1783, 8.507059e+37
    %v1785 = vand.u32 %v1746, 2147483648
    %v1786 = vor.u32 1.1754944e-38, %v1785
    %v1787 = vsel %vm1784, %v1786, %v1782
    %v1788 = vmul.f32 %v1730, %v1787
    %v1789 = vrcp.pop %v1748
    %v1790 = vmul.f32 %v1748, %v1789
    %v1791 = vsub.f32 1.0, %v1790
    %v1792 = vmul.f32 %v1789, %v1791
    %v1793 = vadd.f32 %v1789, %v1792
    %vm1794 = vweird.f32 %v1748
    %vm1795 = vweird.f32 %v1789
    %vm1796 = vmor %vm1794, %vm1795
    %v1797 = vsel %vm1796, %v1789, %v1793
    %v1798 = vand.u32 2147483647, %v1748
    %vm1799 = vcmp.eq.f32.partialorder %v1798, 8.507059e+37
    %v1800 = vand.u32 %v1748, 2147483648
    %v1801 = vor.u32 1.1754944e-38, %v1800
    %v1802 = vsel %vm1799, %v1801, %v1797
    %v1803 = vmul.f32 %v1732, %v1802
    %v1804 = vrcp.pop %v1750
    %v1805 = vmul.f32 %v1750, %v1804
    %v1806 = vsub.f32 1.0, %v1805
    %v1807 = vmul.f32 %v1804, %v1806
    %v1808 = vadd.f32 %v1804, %v1807
    %vm1809 = vweird.f32 %v1750
    %vm1810 = vweird.f32 %v1804
    %vm1811 = vmor %vm1809, %vm1810
    %v1812 = vsel %vm1811, %v1804, %v1808
    %v1813 = vand.u32 2147483647, %v1750
    %vm1814 = vcmp.eq.f32.partialorder %v1813, 8.507059e+37
    %v1815 = vand.u32 %v1750, 2147483648
    %v1816 = vor.u32 1.1754944e-38, %v1815
    %v1817 = vsel %vm1814, %v1816, %v1812
    %v1818 = vmul.f32 %v1734, %v1817
    %v1819 = vrcp.pop %v1752
    %v1820 = vmul.f32 %v1752, %v1819
    %v1821 = vsub.f32 1.0, %v1820
    %v1822 = vmul.f32 %v1819, %v1821
    %v1823 = vadd.f32 %v1819, %v1822
    %vm1824 = vweird.f32 %v1752
    %vm1825 = vweird.f32 %v1819
    %vm1826 = vmor %vm1824, %vm1825
    %v1827 = vsel %vm1826, %v1819, %v1823
    %v1828 = vand.u32 2147483647, %v1752
    %vm1829 = vcmp.eq.f32.partialorder %v1828, 8.507059e+37
    %v1830 = vand.u32 %v1752, 2147483648
    %v1831 = vor.u32 1.1754944e-38, %v1830
    %v1832 = vsel %vm1829, %v1831, %v1827
    %v1833 = vmul.f32 %v1736, %v1832
    %v1834 = vrcp.pop %v1754
    %v1835 = vmul.f32 %v1754, %v1834
    %v1836 = vsub.f32 1.0, %v1835
    %v1837 = vmul.f32 %v1834, %v1836
    %v1838 = vadd.f32 %v1834, %v1837
    %vm1839 = vweird.f32 %v1754
    %vm1840 = vweird.f32 %v1834
    %vm1841 = vmor %vm1839, %vm1840
    %v1842 = vsel %vm1841, %v1834, %v1838
    %v1843 = vand.u32 2147483647, %v1754
    %vm1844 = vcmp.eq.f32.partialorder %v1843, 8.507059e+37
    %v1845 = vand.u32 %v1754, 2147483648
    %v1846 = vor.u32 1.1754944e-38, %v1845
    %v1847 = vsel %vm1844, %v1846, %v1842
    %v1848 = vmul.f32 %v1738, %v1847
    %v1849 = vrcp.pop %v1756
    %v1850 = vmul.f32 %v1756, %v1849
    %v1851 = vsub.f32 1.0, %v1850
    %v1852 = vmul.f32 %v1849, %v1851
    %v1853 = vadd.f32 %v1849, %v1852
    %vm1854 = vweird.f32 %v1756
    %vm1855 = vweird.f32 %v1849
    %vm1856 = vmor %vm1854, %vm1855
    %v1857 = vsel %vm1856, %v1849, %v1853
    %v1858 = vand.u32 2147483647, %v1756
    %vm1859 = vcmp.eq.f32.partialorder %v1858, 8.507059e+37
    %v1860 = vand.u32 %v1756, 2147483648
    %v1861 = vor.u32 1.1754944e-38, %v1860
    %v1862 = vsel %vm1859, %v1861, %v1857
    %v1863 = vmul.f32 %v1740, %v1862
    %v1864 = vrcp.pop %v1758
    %v1865 = vmul.f32 %v1758, %v1864
    %v1866 = vsub.f32 1.0, %v1865
    %v1867 = vmul.f32 %v1864, %v1866
    %v1868 = vadd.f32 %v1864, %v1867
    %vm1869 = vweird.f32 %v1758
    %vm1870 = vweird.f32 %v1864
    %vm1871 = vmor %vm1869, %vm1870
    %v1872 = vsel %vm1871, %v1864, %v1868
    %v1873 = vand.u32 2147483647, %v1758
    %vm1874 = vcmp.eq.f32.partialorder %v1873, 8.507059e+37
    %v1875 = vand.u32 %v1758, 2147483648
    %v1876 = vor.u32 1.1754944e-38, %v1875
    %v1877 = vsel %vm1874, %v1876, %v1872
    %v1878 = vmul.f32 %v1742, %v1877
    %1879 = vst [vmem:[#allocation19] sm:$0xff] %v1773
    %1880 = vst [vmem:[#allocation19 + $0x8] sm:$0xff] %v1788
    %1881 = vst [vmem:[#allocation19 + $0x10] sm:$0xff] %v1803
    %1882 = vst [vmem:[#allocation19 + $0x18] sm:$0xff] %v1818
    %1883 = vst [vmem:[#allocation19 + $0x20] sm:$0xff] %v1833
    %1884 = vst [vmem:[#allocation19 + $0x28] sm:$0xff] %v1848
    %1885 = vst [vmem:[#allocation19 + $0x30] sm:$0xff] %v1863
    %1886 = vst [vmem:[#allocation19 + $0x38] sm:$0xff] %v1878
    // Predicated region
    $region118: #{tpu_custom_call.1} parent=1 // pred_check
      _
    $region119: #{tpu_custom_call.1} parent=1 // pred_check_branch
      %1888 = sbr.rel (0) target = $region121
    $region120: #{tpu_custom_call.1} parent=1 // pred_region
      %1890 = vsyncadd [#allocation4], 0
      %s1891 = sshll.u32 [#allocation19], 4
      %s1892 = int_to_ptr.vmem [resolvable:$true] %s1891
      %s1893 = sshll.u32 %s19, 4
      %s1894 = int_to_ptr.hbm [resolvable:$true] %s1893
      %1899 = dma.vmem_to_hbm [thread:$0]  %s1892, 1024, %s1894, [#allocation4], 128, 128, 8
    $region121: #{tpu_custom_call.1} parent=1 // pred_fallthru
      _
    // Predicated region
    $region122: #{tpu_custom_call.1} parent=1 // pred_check
      _
    $region123: #{tpu_custom_call.1} parent=1 // pred_check_branch
      %1901 = sbr.rel (0) target = $region125
    $region124: #{tpu_custom_call.1} parent=1 // pred_region
      %1903 = dma.done [#allocation4], 1024
    $region125: #{tpu_custom_call.1} parent=1 // pred_fallthru
      _
    %1904 = vsyncpa [#allocation3], 1
    %1905 = vsyncpa [#allocation6], 1
    %1906 = vsyncpa [#allocation9], 1
    %1907 = vsyncpa [#allocation12], 1
    %1908 = vsyncpa [#allocation15], 1
    %1909 = vsyncpa [#allocation18], 1
    %1910 = vsyncpa [#allocation4], 1

</llo_original>
